<compile_context>
chip_gen: v7x
topology: tpu7x:2x2x1
jax: 0.10.0
libtpu: 0.0.40
codegen_flags: <defaults>
</compile_context>

<pallas_src>
import functools

import numpy as np
import jax
import jax.numpy as jnp
from jax.experimental import pallas as pl
from jax.experimental.pallas import tpu as pltpu


def _round_up(x, m):
    return ((x + m - 1) // m) * m


# --------------------------------------------------------------------------
# Kernel 1: per-edge message + scatter into node accumulator + self-loop/bias
# --------------------------------------------------------------------------
def _node_kernel(sel_ref, node_all_ref, node_blk_ref, edge_ref, src1h_ref,
                 dstT_ref, norm_ref, w_io_ref, w_loop_ref, loop_rel_ref,
                 bias_ref, out_ref, acc_ref):
    k = pl.program_id(1)

    @pl.when(k == 0)
    def _():
        acc_ref[...] = jnp.zeros_like(acc_ref)

    # Gather source-node features for this edge tile via one-hot matmul (MXU,
    # bf16 operands, exact f32 accumulation).
    h_src = jnp.dot(src1h_ref[...], node_all_ref[...],
                    preferred_element_type=jnp.float32)               # [tE, D]

    # Composition ('mult') with the per-edge norm folded in pre-matmul (f32).
    comp = h_src * edge_ref[...].astype(jnp.float32) * norm_ref[...]  # [tE, D]

    # Per-edge message. w_io_ref holds either w_in or w_out for this whole
    # edge tile, selected by the scalar-prefetched per-tile selector in the
    # BlockSpec index_map -> single matmul, no where().
    msg = jnp.dot(comp.astype(jnp.bfloat16), w_io_ref[0],
                  preferred_element_type=jnp.float32)                 # [tE, Hp]

    # Scatter-add into this destination-node tile via one-hot^T matmul (MXU).
    acc_ref[...] += jnp.dot(dstT_ref[...], msg.astype(jnp.bfloat16),
                            preferred_element_type=jnp.float32)       # [tN, Hp]

    @pl.when(k == pl.num_programs(1) - 1)
    def _():
        # self-loop message: (h * loop_rel) @ loop_weight, then finalize.
        loop_in = (node_blk_ref[...].astype(jnp.float32)
                   * loop_rel_ref[...].astype(jnp.float32))
        loop_msg = jnp.dot(loop_in.astype(jnp.bfloat16), w_loop_ref[...],
                           preferred_element_type=jnp.float32)        # [tN, Hp]
        out_ref[...] = (acc_ref[...] + loop_msg) * 0.3333333 + bias_ref[...]


@functools.partial(jax.jit, static_argnames=("tile_n", "tile_e"))
def _node_update(sel, node_bf, edge_bf, src1h, dstT, norm, w_io, w_loop,
                 loop_rel, bias, *, tile_n, tile_e):
    Np, D = node_bf.shape
    Ep = edge_bf.shape[0]
    Hp = w_io.shape[2]
    grid = (Np // tile_n, Ep // tile_e)
    return pl.pallas_call(
        _node_kernel,
        out_shape=jax.ShapeDtypeStruct((Np, Hp), jnp.float32),
        grid_spec=pltpu.PrefetchScalarGridSpec(
            num_scalar_prefetch=1,
            grid=grid,
            in_specs=[
                # full node table for the gather (resident across the grid)
                pl.BlockSpec((Np, D), lambda i, k, sel: (0, 0)),
                # this node tile for the self-loop term
                pl.BlockSpec((tile_n, D), lambda i, k, sel: (i, 0)),
                # edge features / gather / scatter / norm, tiled over edges
                pl.BlockSpec((tile_e, D), lambda i, k, sel: (k, 0)),
                pl.BlockSpec((tile_e, Np), lambda i, k, sel: (k, 0)),
                pl.BlockSpec((tile_n, tile_e), lambda i, k, sel: (i, k)),
                pl.BlockSpec((tile_e, 1), lambda i, k, sel: (k, 0)),
                # stacked [w_in, w_out]; per-edge-tile selection via prefetch
                pl.BlockSpec((1, D, Hp), lambda i, k, sel: (sel[k], 0, 0)),
                pl.BlockSpec((D, Hp), lambda i, k, sel: (0, 0)),
                pl.BlockSpec((1, D), lambda i, k, sel: (0, 0)),
                pl.BlockSpec((1, Hp), lambda i, k, sel: (0, 0)),
            ],
            out_specs=pl.BlockSpec((tile_n, Hp), lambda i, k, sel: (i, 0)),
            scratch_shapes=[pltpu.VMEM((tile_n, Hp), jnp.float32)],
        ),
        compiler_params=pltpu.CompilerParams(
            dimension_semantics=("parallel", "arbitrary")),
    )(sel, node_bf, node_bf, edge_bf, src1h, dstT, norm, w_io, w_loop,
      loop_rel, bias)


# --------------------------------------------------------------------------
# Kernel 2: edge update  edge_out = edge_feat @ rel_weight   (fully parallel)
# --------------------------------------------------------------------------
def _edge_kernel(edge_ref, w_rel_ref, out_ref):
    out_ref[...] = jnp.dot(edge_ref[...], w_rel_ref[...],
                           preferred_element_type=jnp.float32)


@functools.partial(jax.jit, static_argnames=("tile_e",))
def _edge_update(edge_bf, w_rel, *, tile_e):
    Ep, D = edge_bf.shape
    Hp = w_rel.shape[1]
    return pl.pallas_call(
        _edge_kernel,
        out_shape=jax.ShapeDtypeStruct((Ep, Hp), jnp.float32),
        grid=(Ep // tile_e,),
        in_specs=[pl.BlockSpec((tile_e, D), lambda e: (e, 0)),
                  pl.BlockSpec((D, Hp), lambda e: (0, 0))],
        out_specs=pl.BlockSpec((tile_e, Hp), lambda e: (e, 0)),
        compiler_params=pltpu.CompilerParams(
            dimension_semantics=("parallel",)),
    )(edge_bf, w_rel)


# --------------------------------------------------------------------------
# Host wrapper: sort edges by direction, pad, build bf16 gather/scatter ops.
# Tile-size guidance: tile_e multiple of 128, tile_n multiple of 8; on v6e
# (128 MiB VMEM) tiles of 1024-2048 edges are fine, halve them on v7x (64 MiB).
# --------------------------------------------------------------------------
def compgcn_forward(node_feat, edge_feat, src, dst, is_rev, edge_norm,
                    w_in, w_out, w_rel, w_loop, loop_rel, bias,
                    *, tile_n=128, tile_e=256):
    node_feat = np.asarray(node_feat, np.float32)
    edge_feat = np.asarray(edge_feat, np.float32)
    src = np.asarray(src, np.int32)
    dst = np.asarray(dst, np.int32)
    is_rev = np.asarray(is_rev, bool)
    N, D = node_feat.shape
    E = edge_feat.shape[0]
    H = np.asarray(w_in).shape[1]

    assert tile_e % 128 == 0 and tile_n % 8 == 0
    Hp = _round_up(H, 128)
    tile_n = min(tile_n, _round_up(N, 8))
    Np = _round_up(N, tile_n)

    # ---- sort edges so each edge tile uses a single (in/out) weight --------
    order = np.argsort(is_rev.astype(np.int32), kind="stable")
    nf = int((~is_rev).sum())
    nr = E - nf
    n_fwd_tiles = (nf + tile_e - 1) // tile_e
    n_rev_tiles = (nr + tile_e - 1) // tile_e
    n_tiles = max(n_fwd_tiles + n_rev_tiles, 1)
    Ep = n_tiles * tile_e
    sel = np.concatenate([np.zeros(n_fwd_tiles, np.int32),
                          np.ones(n_tiles - n_fwd_tiles, np.int32)])

    if edge_norm is None:
        norm_in = np.ones((E, 1), np.float32)
    else:
        norm_in = np.asarray(edge_norm, np.float32).reshape(E, 1)

    edge_s = np.zeros((Ep, D), np.float32)
    norm_s = np.zeros((Ep, 1), np.float32)   # padded edges: norm 0 -> no effect
    src_s = np.zeros((Ep,), np.int32)
    dst_s = np.zeros((Ep,), np.int32)
    fwd, rev = order[:nf], order[nf:]
    off = n_fwd_tiles * tile_e
    edge_s[:nf] = edge_feat[fwd];         edge_s[off:off + nr] = edge_feat[rev]
    norm_s[:nf] = norm_in[fwd];           norm_s[off:off + nr] = norm_in[rev]
    src_s[:nf] = src[fwd];                src_s[off:off + nr] = src[rev]
    dst_s[:nf] = dst[fwd];                dst_s[off:off + nr] = dst[rev]

    # dense one-hot gather/scatter operators (exact 0/1 values, bf16)
    src1h = np.zeros((Ep, Np), np.float32)
    src1h[np.arange(nf), src_s[:nf]] = 1.0
    src1h[off + np.arange(nr), src_s[off:off + nr]] = 1.0
    dstT = np.zeros((Np, Ep), np.float32)
    dstT[dst_s[:nf], np.arange(nf)] = 1.0
    dstT[dst_s[off:off + nr], off + np.arange(nr)] = 1.0

    node_p = np.zeros((Np, D), np.float32)
    node_p[:N] = node_feat

    def pad_w(w):
        out = np.zeros((D, Hp), np.float32)
        out[:, :H] = np.asarray(w, np.float32)
        return out

    w_io = np.stack([pad_w(w_in), pad_w(w_out)], axis=0)        # [2, D, Hp]
    w_loop_p = pad_w(w_loop)
    w_rel_p = pad_w(w_rel)
    bias_p = np.zeros((1, Hp), np.float32)
    bias_p[0, :H] = np.asarray(bias, np.float32)
    loop_rel_2d = np.asarray(loop_rel, np.float32).reshape(1, D)

    node_out_p = _node_update(
        jnp.asarray(sel, jnp.int32),
        jnp.asarray(node_p, jnp.bfloat16),
        jnp.asarray(edge_s, jnp.bfloat16),
        jnp.asarray(src1h, jnp.bfloat16),
        jnp.asarray(dstT, jnp.bfloat16),
        jnp.asarray(norm_s, jnp.float32),
        jnp.asarray(w_io, jnp.bfloat16),
        jnp.asarray(w_loop_p, jnp.bfloat16),
        jnp.asarray(loop_rel_2d, jnp.bfloat16),
        jnp.asarray(bias_p, jnp.float32),
        tile_n=tile_n, tile_e=tile_e)

    Ep2 = _round_up(E, tile_e)
    edge_p2 = np.zeros((Ep2, D), np.float32)
    edge_p2[:E] = edge_feat
    edge_out_p = _edge_update(jnp.asarray(edge_p2, jnp.bfloat16),
                              jnp.asarray(w_rel_p, jnp.bfloat16),
                              tile_e=tile_e)

    return node_out_p[:N, :H], edge_out_p[:E, :H]


# --------------------------------------------------------------------------
# Pure-JAX f32 reference (module semantics) + demo
# --------------------------------------------------------------------------
def xavier_uniform(key, shape):
    fan_in, fan_out = shape[0], shape[1]
    bound = (6.0 / (fan_in + fan_out)) ** 0.5
    return jax.random.uniform(key, shape, jnp.float32, -bound, bound)


def reference(node_feat, edge_feat, src, dst, is_rev, edge_norm,
              w_in, w_out, w_rel, w_loop, loop_rel, bias):
    N = node_feat.shape[0]
    comp = node_feat[src] * edge_feat
    msg = jnp.where(is_rev[:, None], comp @ w_out, comp @ w_in) * edge_norm
    agg = jnp.zeros((N, w_in.shape[1]), jnp.float32).at[dst].add(msg)
    loop_msg = (node_feat * loop_rel) @ w_loop
    node_out = (agg + loop_msg) * 0.3333333 + bias
    edge_out = edge_feat @ w_rel
    return node_out, edge_out


if __name__ == "__main__":
    N, E, D, H = 256, 512, 128, 64   # nodes, edges, input_dim, hidden_dim

    key = jax.random.PRNGKey(0)
    keys = jax.random.split(key, 11)

    w_in = xavier_uniform(keys[0], (D, H))
    w_out = xavier_uniform(keys[1], (D, H))
    w_rel = xavier_uniform(keys[2], (D, H))
    w_loop = xavier_uniform(keys[3], (D, H))
    loop_rel = xavier_uniform(keys[4], (1, D))
    bias = jnp.zeros((H,), jnp.float32)

    node_feat = jax.random.normal(keys[5], (N, D), jnp.float32)
    edge_feat = jax.random.normal(keys[6], (E, D), jnp.float32)
    src = jax.random.randint(keys[7], (E,), 0, N)
    dst = jax.random.randint(keys[8], (E,), 0, N)
    is_rev = jax.random.bernoulli(keys[9], 0.5, (E,))
    edge_norm = jax.random.uniform(keys[10], (E, 1), jnp.float32, 0.5, 1.5)

    node_out, edge_out = compgcn_forward(
        node_feat, edge_feat, src, dst, is_rev, edge_norm,
        w_in, w_out, w_rel, w_loop, loop_rel, bias,
        tile_n=128, tile_e=256)
    jax.block_until_ready((node_out, edge_out))

    ref_node, ref_edge = reference(node_feat, edge_feat, src, dst, is_rev,
                                   edge_norm, w_in, w_out, w_rel, w_loop,
                                   loop_rel, bias)
    assert node_out.shape == ref_node.shape and edge_out.shape == ref_edge.shape
    # bf16 MXU operands -> looser tolerance than pure-f32
    assert jnp.allclose(node_out, ref_node, atol=5e-2, rtol=5e-2), (
        float(jnp.max(jnp.abs(node_out - ref_node))))
    assert jnp.allclose(edge_out, ref_edge, atol=5e-2, rtol=5e-2), (
        float(jnp.max(jnp.abs(edge_out - ref_edge))))

    print("KERNEL_OK")
</pallas_src>

<mosaic_0001>
module attributes {stable_mosaic.version = 11 : i64} {
  func.func @_node_kernel(%arg0: i32, %arg1: i32, %arg2: memref<3xi32, #tpu.memory_space<smem>>, %arg3: memref<256x128xbf16, #tpu.memory_space<vmem>>, %arg4: memref<128x128xbf16, #tpu.memory_space<vmem>>, %arg5: memref<256x128xbf16, #tpu.memory_space<vmem>>, %arg6: memref<256x256xbf16, #tpu.memory_space<vmem>>, %arg7: memref<128x256xbf16, #tpu.memory_space<vmem>>, %arg8: memref<256x1xf32, #tpu.memory_space<vmem>>, %arg9: memref<1x128x128xbf16, #tpu.memory_space<vmem>>, %arg10: memref<128x128xbf16, #tpu.memory_space<vmem>>, %arg11: memref<1x128xbf16, #tpu.memory_space<vmem>>, %arg12: memref<1x128xf32, #tpu.memory_space<vmem>>, %arg13: memref<128x128xf32, #tpu.memory_space<vmem>>, %arg14: memref<128x128xf32, #tpu.memory_space<vmem>>) attributes {dimension_semantics = [#tpu.dimension_semantics<parallel>, #tpu.dimension_semantics<arbitrary>], iteration_bounds = array<i64: 2, 3>, scalar_prefetch = 1 : i64, scratch_operands = 1 : i64, tpu.core_type = #tpu.core_type<tc>, window_params = [{pipeline_mode = #tpu.pipeline_mode<synchronous>, transform_indices = @transform_0, window_bounds = array<i64: 256, 128>}, {transform_indices = @transform_1, window_bounds = array<i64: 128, 128>}, {transform_indices = @transform_2, window_bounds = array<i64: 256, 128>}, {transform_indices = @transform_3, window_bounds = array<i64: 256, 256>}, {transform_indices = @transform_4, window_bounds = array<i64: 128, 256>}, {transform_indices = @transform_5, window_bounds = array<i64: 256, 1>}, {transform_indices = @transform_6, window_bounds = array<i64: 1, 128, 128>}, {pipeline_mode = #tpu.pipeline_mode<synchronous>, transform_indices = @transform_7, window_bounds = array<i64: 128, 128>}, {pipeline_mode = #tpu.pipeline_mode<synchronous>, transform_indices = @transform_8, window_bounds = array<i64: 1, 128>}, {pipeline_mode = #tpu.pipeline_mode<synchronous>, transform_indices = @transform_9, window_bounds = array<i64: 1, 128>}, {transform_indices = @transform_10, window_bounds = array<i64: 128, 128>}]} {
    %c0_i32 = arith.constant 0 : i32
    %0 = arith.cmpi eq, %arg1, %c0_i32 : i32
    %1 = arith.extui %0 : i1 to i32
    %c0_i32_0 = arith.constant 0 : i32
    %2 = arith.cmpi ne, %1, %c0_i32_0 : i32
    scf.if %2 {
      %cst_20 = arith.constant 0.000000e+00 : f32
      %25 = vector.broadcast %cst_20 : f32 to vector<128x128xf32>
      %c0_21 = arith.constant 0 : index
      %c0_22 = arith.constant 0 : index
      %26 = vector.load %arg14[%c0_21, %c0_22] : memref<128x128xf32, #tpu.memory_space<vmem>>, vector<128x128xf32>
      tpu.vector_store %arg14[%c0_21, %c0_22], %25 {strides = array<i32>} : memref<128x128xf32, #tpu.memory_space<vmem>>, vector<128x128xf32>,
    } else {
    }
    %c0 = arith.constant 0 : index
    %c0_1 = arith.constant 0 : index
    %3 = vector.load %arg6[%c0, %c0_1] : memref<256x256xbf16, #tpu.memory_space<vmem>>, vector<256x256xbf16>
    %c0_2 = arith.constant 0 : index
    %c0_3 = arith.constant 0 : index
    %4 = vector.load %arg3[%c0_2, %c0_3] : memref<256x128xbf16, #tpu.memory_space<vmem>>, vector<256x128xbf16>
    %cst = arith.constant dense<0.000000e+00> : vector<256x128xf32>
    %5 = tpu.matmul %3, %4, %cst {dimension_numbers = #tpu.dot_dimension_numbers<[1], [0], [0], [1], [0, 0, 1, 1], [], []>} : vector<256x256xbf16>, vector<256x128xbf16>, vector<256x128xf32> -> vector<256x128xf32>
    %c0_4 = arith.constant 0 : index
    %c0_5 = arith.constant 0 : index
    %6 = vector.load %arg5[%c0_4, %c0_5] : memref<256x128xbf16, #tpu.memory_space<vmem>>, vector<256x128xbf16>
    %7 = arith.extf %6 : vector<256x128xbf16> to vector<256x128xf32>
    %8 = arith.mulf %5, %7 : vector<256x128xf32>
    %c0_6 = arith.constant 0 : index
    %c0_7 = arith.constant 0 : index
    %9 = vector.load %arg8[%c0_6, %c0_7] : memref<256x1xf32, #tpu.memory_space<vmem>>, vector<256x1xf32>
    %10 = vector.broadcast %9 : vector<256x1xf32> to vector<256x128xf32>
    %11 = arith.mulf %8, %10 : vector<256x128xf32>
    %12 = arith.truncf %11 : vector<256x128xf32> to vector<256x128xbf16>
    %c0_8 = arith.constant 0 : index
    %c0_9 = arith.constant 0 : index
    %c0_10 = arith.constant 0 : index
    %13 = vector.load %arg9[%c0_8, %c0_9, %c0_10] : memref<1x128x128xbf16, #tpu.memory_space<vmem>>, vector<1x128x128xbf16>
    %14 = vector.shape_cast %13 : vector<1x128x128xbf16> to vector<128x128xbf16>
    %cst_11 = arith.constant dense<0.000000e+00> : vector<256x128xf32>
    %15 = tpu.matmul %12, %14, %cst_11 {dimension_numbers = #tpu.dot_dimension_numbers<[1], [0], [0], [1], [0, 0, 1, 1], [], []>} : vector<256x128xbf16>, vector<128x128xbf16>, vector<256x128xf32> -> vector<256x128xf32>
    %c0_12 = arith.constant 0 : index
    %c0_13 = arith.constant 0 : index
    %16 = vector.load %arg14[%c0_12, %c0_13] : memref<128x128xf32, #tpu.memory_space<vmem>>, vector<128x128xf32>
    %c0_14 = arith.constant 0 : index
    %c0_15 = arith.constant 0 : index
    %17 = vector.load %arg7[%c0_14, %c0_15] : memref<128x256xbf16, #tpu.memory_space<vmem>>, vector<128x256xbf16>
    %18 = arith.truncf %15 : vector<256x128xf32> to vector<256x128xbf16>
    %cst_16 = arith.constant dense<0.000000e+00> : vector<128x128xf32>
    %19 = tpu.matmul %17, %18, %cst_16 {dimension_numbers = #tpu.dot_dimension_numbers<[1], [0], [0], [1], [0, 0, 1, 1], [], []>} : vector<128x256xbf16>, vector<256x128xbf16>, vector<128x128xf32> -> vector<128x128xf32>
    %20 = arith.addf %16, %19 : vector<128x128xf32>
    %c0_17 = arith.constant 0 : index
    %c0_18 = arith.constant 0 : index
    %21 = vector.load %arg14[%c0_17, %c0_18] : memref<128x128xf32, #tpu.memory_space<vmem>>, vector<128x128xf32>
    tpu.vector_store %arg14[%c0_17, %c0_18], %20 {strides = array<i32>} : memref<128x128xf32, #tpu.memory_space<vmem>>, vector<128x128xf32>,
    %c2_i32 = arith.constant 2 : i32
    %22 = arith.cmpi eq, %arg1, %c2_i32 : i32
    %23 = arith.extui %22 : i1 to i32
    %c0_i32_19 = arith.constant 0 : i32
    %24 = arith.cmpi ne, %23, %c0_i32_19 : i32
    scf.if %24 {
      %c0_20 = arith.constant 0 : index
      %c0_21 = arith.constant 0 : index
      %25 = vector.load %arg4[%c0_20, %c0_21] : memref<128x128xbf16, #tpu.memory_space<vmem>>, vector<128x128xbf16>
      %26 = arith.extf %25 : vector<128x128xbf16> to vector<128x128xf32>
      %c0_22 = arith.constant 0 : index
      %c0_23 = arith.constant 0 : index
      %27 = vector.load %arg11[%c0_22, %c0_23] : memref<1x128xbf16, #tpu.memory_space<vmem>>, vector<1x128xbf16>
      %28 = arith.extf %27 : vector<1x128xbf16> to vector<1x128xf32>
      %29 = vector.broadcast %28 : vector<1x128xf32> to vector<128x128xf32>
      %30 = arith.mulf %26, %29 : vector<128x128xf32>
      %31 = arith.truncf %30 : vector<128x128xf32> to vector<128x128xbf16>
      %c0_24 = arith.constant 0 : index
      %c0_25 = arith.constant 0 : index
      %32 = vector.load %arg10[%c0_24, %c0_25] : memref<128x128xbf16, #tpu.memory_space<vmem>>, vector<128x128xbf16>
      %cst_26 = arith.constant dense<0.000000e+00> : vector<128x128xf32>
      %33 = tpu.matmul %31, %32, %cst_26 {dimension_numbers = #tpu.dot_dimension_numbers<[1], [0], [0], [1], [0, 0, 1, 1], [], []>} : vector<128x128xbf16>, vector<128x128xbf16>, vector<128x128xf32> -> vector<128x128xf32>
      %c0_27 = arith.constant 0 : index
      %c0_28 = arith.constant 0 : index
      %34 = vector.load %arg14[%c0_27, %c0_28] : memref<128x128xf32, #tpu.memory_space<vmem>>, vector<128x128xf32>
      %35 = arith.addf %34, %33 : vector<128x128xf32>
      %cst_29 = arith.constant 0.333333313 : f32
      %36 = vector.broadcast %cst_29 : f32 to vector<128x128xf32>
      %37 = arith.mulf %35, %36 : vector<128x128xf32>
      %c0_30 = arith.constant 0 : index
      %c0_31 = arith.constant 0 : index
      %38 = vector.load %arg12[%c0_30, %c0_31] : memref<1x128xf32, #tpu.memory_space<vmem>>, vector<1x128xf32>
      %39 = vector.broadcast %38 : vector<1x128xf32> to vector<128x128xf32>
      %40 = arith.addf %37, %39 : vector<128x128xf32>
      %c0_32 = arith.constant 0 : index
      %c0_33 = arith.constant 0 : index
      %41 = vector.load %arg13[%c0_32, %c0_33] : memref<128x128xf32, #tpu.memory_space<vmem>>, vector<128x128xf32>
      tpu.vector_store %arg13[%c0_32, %c0_33], %40 {strides = array<i32>} : memref<128x128xf32, #tpu.memory_space<vmem>>, vector<128x128xf32>,
    } else {
    }
    return
  }
  func.func @transform_0(%arg0: i32, %arg1: i32, %arg2: memref<3xi32, #tpu.memory_space<smem>>) -> (i32, i32) {
    %c0_i32 = arith.constant 0 : i32
    %c0_i32_0 = arith.constant 0 : i32
    %c0_i32_1 = arith.constant 0 : i32
    return %c0_i32, %c0_i32_0 : i32, i32
  }
  func.func @transform_1(%arg0: i32, %arg1: i32, %arg2: memref<3xi32, #tpu.memory_space<smem>>) -> (i32, i32) {
    %c0_i32 = arith.constant 0 : i32
    %c0_i32_0 = arith.constant 0 : i32
    return %arg0, %c0_i32 : i32, i32
  }
  func.func @transform_2(%arg0: i32, %arg1: i32, %arg2: memref<3xi32, #tpu.memory_space<smem>>) -> (i32, i32) {
    %c0_i32 = arith.constant 0 : i32
    %c0_i32_0 = arith.constant 0 : i32
    return %arg1, %c0_i32 : i32, i32
  }
  func.func @transform_3(%arg0: i32, %arg1: i32, %arg2: memref<3xi32, #tpu.memory_space<smem>>) -> (i32, i32) {
    %c0_i32 = arith.constant 0 : i32
    %c0_i32_0 = arith.constant 0 : i32
    return %arg1, %c0_i32 : i32, i32
  }
  func.func @transform_4(%arg0: i32, %arg1: i32, %arg2: memref<3xi32, #tpu.memory_space<smem>>) -> (i32, i32) {
    %c0_i32 = arith.constant 0 : i32
    return %arg0, %arg1 : i32, i32
  }
  func.func @transform_5(%arg0: i32, %arg1: i32, %arg2: memref<3xi32, #tpu.memory_space<smem>>) -> (i32, i32) {
    %c0_i32 = arith.constant 0 : i32
    %c0_i32_0 = arith.constant 0 : i32
    return %arg1, %c0_i32 : i32, i32
  }
  func.func @transform_6(%arg0: i32, %arg1: i32, %arg2: memref<3xi32, #tpu.memory_space<smem>>) -> (i32, i32, i32) {
    %0 = arith.index_cast %arg1 : i32 to index
    %1 = memref.load %arg2[%0] : memref<3xi32, #tpu.memory_space<smem>>
    %c0_i32 = arith.constant 0 : i32
    %c0_i32_0 = arith.constant 0 : i32
    %c0_i32_1 = arith.constant 0 : i32
    return %1, %c0_i32, %c0_i32_0 : i32, i32, i32
  }
  func.func @transform_7(%arg0: i32, %arg1: i32, %arg2: memref<3xi32, #tpu.memory_space<smem>>) -> (i32, i32) {
    %c0_i32 = arith.constant 0 : i32
    %c0_i32_0 = arith.constant 0 : i32
    %c0_i32_1 = arith.constant 0 : i32
    return %c0_i32, %c0_i32_0 : i32, i32
  }
  func.func @transform_8(%arg0: i32, %arg1: i32, %arg2: memref<3xi32, #tpu.memory_space<smem>>) -> (i32, i32) {
    %c0_i32 = arith.constant 0 : i32
    %c0_i32_0 = arith.constant 0 : i32
    %c0_i32_1 = arith.constant 0 : i32
    return %c0_i32, %c0_i32_0 : i32, i32
  }
  func.func @transform_9(%arg0: i32, %arg1: i32, %arg2: memref<3xi32, #tpu.memory_space<smem>>) -> (i32, i32) {
    %c0_i32 = arith.constant 0 : i32
    %c0_i32_0 = arith.constant 0 : i32
    %c0_i32_1 = arith.constant 0 : i32
    return %c0_i32, %c0_i32_0 : i32, i32
  }
  func.func @transform_10(%arg0: i32, %arg1: i32, %arg2: memref<3xi32, #tpu.memory_space<smem>>) -> (i32, i32) {
    %c0_i32 = arith.constant 0 : i32
    %c0_i32_0 = arith.constant 0 : i32
    return %arg0, %c0_i32 : i32, i32
  }
}

</mosaic_0001>

<llo_original>
// kernel: _node_update.1
$region0: #{_node_update.1}
  #allocation0 [shape = 'u32[]', space=smem, size = 0x4, offset = 0x4, fixed_abs, tag = 'smem constant byte address 0x4 - core index']
  #allocation1 [shape = 'u32[144,128]{1,0:T(1,128)}', space=vmem, size = 0x12000, scoped, tag = 'internal scratch']
  #allocation2 [shape = 'f32[128,128]{1,0:T(8,128)}', space=vmem, size = 0x10000, scoped, tag = 'scratch operand']
  #allocation3 [shape = 's32[1]{0}', space=sflag, size = 0x4, scoped, tag = 'scoped memory for _node_update.1']
  #allocation4 [shape = 'u8[512]{0}', space=smem, size = 0x200, scoped, tag = 'prefetched SMEM operand 0']
  %s0 = inlined_call_operand.vmem [shape: s32[3], index: 0, kind: input, shape index: {}]
  %s1 = inlined_call_operand.hbm [shape: bf16[256,128], index: 1, kind: input, shape index: {}, may-alias: {1,2}]
  %s2 = inlined_call_operand.hbm [shape: bf16[256,128], index: 2, kind: input, shape index: {}, may-alias: {1,2}]
  %s3 = inlined_call_operand.hbm [shape: bf16[768,128], index: 3, kind: input, shape index: {}]
  %s4 = inlined_call_operand.vmem [shape: bf16[768,256], index: 4, kind: input, shape index: {}]
  %s5 = inlined_call_operand.hbm [shape: bf16[256,768], index: 5, kind: input, shape index: {}]
  %s6 = inlined_call_operand.vmem [shape: f32[768,1], index: 6, kind: input, shape index: {}]
  %s7 = inlined_call_operand.hbm [shape: bf16[2,128,128], index: 7, kind: input, shape index: {}]
  %s8 = inlined_call_operand.hbm [shape: bf16[128,128], index: 8, kind: input, shape index: {}]
  %s9 = inlined_call_operand.vmem [shape: bf16[1,128], index: 9, kind: input, shape index: {}]
  %s10 = inlined_call_operand.vmem [shape: f32[1,128], index: 10, kind: input, shape index: {}]
  %s11 = inlined_call_operand.hbm [shape: f32[256,128], index: 11, kind: output, shape index: {}]
  %s12 = sld [smem:[#allocation0]]
  $region105: #{_node_update.1} parent=0
    _
  %s14 = ssub.s32 1, %s12
  %s15 = scalar_select 0, %s14, %s12
  %s16 = sshll.u32 %s0, 4
  %s17 = int_to_ptr.vmem [resolvable:$true] %s16
  %19 = dma.vmem_to_smem %s17, 16, [#allocation4], [#allocation3]
  %20 = dma.done [#allocation3], 16
  %21 = sfence
  $region1: #{_node_update.1} parent=0
    #allocation5 [shape = 'u8[65536]{0}', space=vmem, size = 0x10000, scoped, tag = 'input window, operand 1, single buffered']
    #allocation6 [shape = 's32[2]{0}', space=sflag, size = 0x8, scoped, tag = 'scoped memory for _node_update.1']
    #allocation7 [shape = 's32[2]{0}', space=sflag, size = 0x8, scoped, tag = 'scoped memory for _node_update.1']
    #allocation8 [shape = 'u8[65536]{0}', space=vmem, size = 0x10000, scoped, tag = 'input window, operand 2']
    #allocation9 [shape = 's32[2]{0}', space=sflag, size = 0x8, scoped, tag = 'scoped memory for _node_update.1']
    #allocation10 [shape = 'u8[131072]{0}', space=vmem, size = 0x20000, scoped, tag = 'input window, operand 3']
    #allocation11 [shape = 'u8[131072]{0}', space=vmem, size = 0x20000, scoped, tag = 'input window, operand 5']
    #allocation12 [shape = 's32[2]{0}', space=sflag, size = 0x8, scoped, tag = 'scoped memory for _node_update.1']
    #allocation13 [shape = 'u8[65536]{0}', space=vmem, size = 0x10000, scoped, tag = 'input window, operand 7']
    #allocation14 [shape = 'u8[32768]{0}', space=vmem, size = 0x8000, scoped, tag = 'input window, operand 8, single buffered']
    #allocation15 [shape = 's32[1]{0}', space=sflag, size = 0x4, scoped, tag = 'scoped memory for _node_update.1']
    #allocation16 [shape = 'u8[131072]{0}', space=vmem, size = 0x20000, scoped, tag = 'output window, operand 0']
    %22 = vsyncpa [#allocation6], 0
    %23 = vsyncpa [#allocation9], 0
    %s24 = scalar_lea.sflag [#allocation9], 1
    %25 = vsyncpa %s24, 0
    %26 = vsyncpa [#allocation12], 0
    %s27 = scalar_lea.sflag [#allocation12], 1
    %28 = vsyncpa %s27, 0
    %29 = vsyncpa [#allocation15], 0
    %30 = vsyncpa [#allocation7], 0
    %s31 = scalar_lea.sflag [#allocation7], 1
    %32 = vsyncpa %s31, 0
    loop: start=0, step=1, limit=8
    $region2: #{_node_update.1} parent=1 // loop_pre_header
      _
    $region3: #{_node_update.1} parent=1 // loop_header
      %s34 = sphi 0, %s38
      %p35 = scmp.ge.s32.totalorder %s34, 8
      %s41 = sphi 0, %s53
      %s42 = sphi 0, %s49
      %s43 = sphi 0, %s41
      %s44 = sphi 0, %s42
      %s45 = sphi 0, %s43
      %s46 = sphi 0, %s44
      %s54 = sphi 0, %s54
      %s56 = sphi 0, %s54
      %s57 = sphi 0, %s56
      %s71 = sphi 0, %s57
      %s77 = sphi 0, %s79
      %s80 = sphi 0, %s77
      %s81 = sphi 0, %s80
      %s97 = sphi 0, %s81
      %s103 = sphi 0, %s105
      %s106 = sphi 0, %s103
      %s107 = sphi 0, %s106
      %s123 = sphi 0, %s107
      %s129 = sphi 0, %s131
      %s132 = sphi 0, %s129
      %s133 = sphi 0, %s132
      %s149 = sphi 0, %s133
      %s157 = sphi 0, %s159
      %s160 = sphi 0, %s157
      %s161 = sphi 0, %s160
      %s177 = sphi 0, %s161
      %s183 = sphi 0, %s185
      %s186 = sphi 0, %s183
      %s187 = sphi 0, %s186
      %s203 = sphi 0, %s187
      %s211 = sphi 0, %s213
      %s214 = sphi 0, %s211
      %s215 = sphi 0, %s214
      %s231 = sphi 0, %s215
      %s235 = sphi 0, %s235
      %s237 = sphi 0, %s235
      %s238 = sphi 0, %s237
      %s252 = sphi 0, %s238
      %s256 = sphi 0, %s256
      %s258 = sphi 0, %s256
      %s259 = sphi 0, %s258
      %s273 = sphi 0, %s259
      %s277 = sphi 0, %s277
      %s279 = sphi 0, %s277
      %s280 = sphi 0, %s279
      %s294 = sphi 0, %s280
      %s300 = sphi 0, %s302
      %s303 = sphi 0, %s300
      %s304 = sphi 0, %s303
      %s320 = sphi 0, %s304
    $region4: #{_node_update.1} parent=1 // loop_header_branch
      %37 = sbr.rel (%p35) target = $region8
    $region5: #{_node_update.1} parent=1 // loop_body
      %s39 = ssub.s32 %s34, 1
      %s40 = ssub.s32 %s34, 2
      %s47 = sadd.s32 1, %s42
      %p48 = scmp.ge.s32.totalorder %s47, 3
      %s49 = scalar_select %p48, 0, %s47
      %s50 = sadd.s32 1, %s41
      %s51 = scalar_select %p48, %s50, %s41
      %p52 = scmp.ge.s32.totalorder %s51, 2
      %s53 = scalar_select %p52, 0, %s51
      %s55 = sadd.s32 %s54, 1
      %p58 = scmp.eq.s32.totalorder %s34, 5
      %p59 = scmp.ne.s32.totalorder %s54, %s56
      %p60 = scmp.eq.s32.totalorder %s34, 0
      %p61 = por %p59, %p60
      %p62 = scmp.ne.s32.totalorder %s54, %s56
      %p63 = scmp.eq.s32.totalorder %s39, 5
      %p64 = por %p62, %p63
      %p65 = scmp.ne.s32.totalorder %s56, %s57
      %p66 = scmp.eq.s32.totalorder %s39, 0
      %p67 = por %p65, %p66
      %p68 = scmp.ne.s32.totalorder %s56, %s57
      %p69 = scmp.eq.s32.totalorder %s40, 5
      %p70 = por %p68, %p69
      %p72 = scmp.ne.s32.totalorder %s57, %s71
      %p73 = scmp.eq.s32.totalorder %s40, 0
      %p74 = por %p72, %p73
      %s75 = ssub.s32 %s41, %s53
      %p76 = scmp.eq.s32.totalorder %s75, 0
      %s78 = sadd.s32 %s77, 1
      %s79 = scalar_select %p76, %s77, %s78
      %p82 = pneg %p76
      %p83 = scmp.eq.s32.totalorder %s34, 5
      %p84 = por %p82, %p83
      %p85 = scmp.ne.s32.totalorder %s77, %s80
      %p86 = scmp.eq.s32.totalorder %s34, 0
      %p87 = por %p85, %p86
      %p88 = scmp.ne.s32.totalorder %s77, %s80
      %p89 = scmp.eq.s32.totalorder %s39, 5
      %p90 = por %p88, %p89
      %p91 = scmp.ne.s32.totalorder %s80, %s81
      %p92 = scmp.eq.s32.totalorder %s39, 0
      %p93 = por %p91, %p92
      %p94 = scmp.ne.s32.totalorder %s80, %s81
      %p95 = scmp.eq.s32.totalorder %s40, 5
      %p96 = por %p94, %p95
      %p98 = scmp.ne.s32.totalorder %s81, %s97
      %p99 = scmp.eq.s32.totalorder %s40, 0
      %p100 = por %p98, %p99
      %s101 = ssub.s32 %s42, %s49
      %p102 = scmp.eq.s32.totalorder %s101, 0
      %s104 = sadd.s32 %s103, 1
      %s105 = scalar_select %p102, %s103, %s104
      %p108 = pneg %p102
      %p109 = scmp.eq.s32.totalorder %s34, 5
      %p110 = por %p108, %p109
      %p111 = scmp.ne.s32.totalorder %s103, %s106
      %p112 = scmp.eq.s32.totalorder %s34, 0
      %p113 = por %p111, %p112
      %p114 = scmp.ne.s32.totalorder %s103, %s106
      %p115 = scmp.eq.s32.totalorder %s39, 5
      %p116 = por %p114, %p115
      %p117 = scmp.ne.s32.totalorder %s106, %s107
      %p118 = scmp.eq.s32.totalorder %s39, 0
      %p119 = por %p117, %p118
      %p120 = scmp.ne.s32.totalorder %s106, %s107
      %p121 = scmp.eq.s32.totalorder %s40, 5
      %p122 = por %p120, %p121
      %p124 = scmp.ne.s32.totalorder %s107, %s123
      %p125 = scmp.eq.s32.totalorder %s40, 0
      %p126 = por %p124, %p125
      %s127 = ssub.s32 %s42, %s49
      %p128 = scmp.eq.s32.totalorder %s127, 0
      %s130 = sadd.s32 %s129, 1
      %s131 = scalar_select %p128, %s129, %s130
      %p134 = pneg %p128
      %p135 = scmp.eq.s32.totalorder %s34, 5
      %p136 = por %p134, %p135
      %p137 = scmp.ne.s32.totalorder %s129, %s132
      %p138 = scmp.eq.s32.totalorder %s34, 0
      %p139 = por %p137, %p138
      %p140 = scmp.ne.s32.totalorder %s129, %s132
      %p141 = scmp.eq.s32.totalorder %s39, 5
      %p142 = por %p140, %p141
      %p143 = scmp.ne.s32.totalorder %s132, %s133
      %p144 = scmp.eq.s32.totalorder %s39, 0
      %p145 = por %p143, %p144
      %p146 = scmp.ne.s32.totalorder %s132, %s133
      %p147 = scmp.eq.s32.totalorder %s40, 5
      %p148 = por %p146, %p147
      %p150 = scmp.ne.s32.totalorder %s133, %s149
      %p151 = scmp.eq.s32.totalorder %s40, 0
      %p152 = por %p150, %p151
      %s153 = ssub.s32 %s41, %s53
      %s154 = ssub.s32 %s42, %s49
      %s155 = sor.u32 %s153, %s154
      %p156 = scmp.eq.s32.totalorder %s155, 0
      %s158 = sadd.s32 %s157, 1
      %s159 = scalar_select %p156, %s157, %s158
      %p162 = pneg %p156
      %p163 = scmp.eq.s32.totalorder %s34, 5
      %p164 = por %p162, %p163
      %p165 = scmp.ne.s32.totalorder %s157, %s160
      %p166 = scmp.eq.s32.totalorder %s34, 0
      %p167 = por %p165, %p166
      %p168 = scmp.ne.s32.totalorder %s157, %s160
      %p169 = scmp.eq.s32.totalorder %s39, 5
      %p170 = por %p168, %p169
      %p171 = scmp.ne.s32.totalorder %s160, %s161
      %p172 = scmp.eq.s32.totalorder %s39, 0
      %p173 = por %p171, %p172
      %p174 = scmp.ne.s32.totalorder %s160, %s161
      %p175 = scmp.eq.s32.totalorder %s40, 5
      %p176 = por %p174, %p175
      %p178 = scmp.ne.s32.totalorder %s161, %s177
      %p179 = scmp.eq.s32.totalorder %s40, 0
      %p180 = por %p178, %p179
      %s181 = ssub.s32 %s42, %s49
      %p182 = scmp.eq.s32.totalorder %s181, 0
      %s184 = sadd.s32 %s183, 1
      %s185 = scalar_select %p182, %s183, %s184
      %p188 = pneg %p182
      %p189 = scmp.eq.s32.totalorder %s34, 5
      %p190 = por %p188, %p189
      %p191 = scmp.ne.s32.totalorder %s183, %s186
      %p192 = scmp.eq.s32.totalorder %s34, 0
      %p193 = por %p191, %p192
      %p194 = scmp.ne.s32.totalorder %s183, %s186
      %p195 = scmp.eq.s32.totalorder %s39, 5
      %p196 = por %p194, %p195
      %p197 = scmp.ne.s32.totalorder %s186, %s187
      %p198 = scmp.eq.s32.totalorder %s39, 0
      %p199 = por %p197, %p198
      %p200 = scmp.ne.s32.totalorder %s186, %s187
      %p201 = scmp.eq.s32.totalorder %s40, 5
      %p202 = por %p200, %p201
      %p204 = scmp.ne.s32.totalorder %s187, %s203
      %p205 = scmp.eq.s32.totalorder %s40, 0
      %p206 = por %p204, %p205
      %s207 = sld [smem:[#allocation4 + %s42]]
      %s208 = sld [smem:[#allocation4 + %s49]]
      %s209 = ssub.s32 %s207, %s208
      %p210 = scmp.eq.s32.totalorder %s209, 0
      %s212 = sadd.s32 %s211, 1
      %s213 = scalar_select %p210, %s211, %s212
      %p216 = pneg %p210
      %p217 = scmp.eq.s32.totalorder %s34, 5
      %p218 = por %p216, %p217
      %p219 = scmp.ne.s32.totalorder %s211, %s214
      %p220 = scmp.eq.s32.totalorder %s34, 0
      %p221 = por %p219, %p220
      %p222 = scmp.ne.s32.totalorder %s211, %s214
      %p223 = scmp.eq.s32.totalorder %s39, 5
      %p224 = por %p222, %p223
      %p225 = scmp.ne.s32.totalorder %s214, %s215
      %p226 = scmp.eq.s32.totalorder %s39, 0
      %p227 = por %p225, %p226
      %p228 = scmp.ne.s32.totalorder %s214, %s215
      %p229 = scmp.eq.s32.totalorder %s40, 5
      %p230 = por %p228, %p229
      %p232 = scmp.ne.s32.totalorder %s215, %s231
      %p233 = scmp.eq.s32.totalorder %s40, 0
      %p234 = por %p232, %p233
      %s236 = sadd.s32 %s235, 1
      %p239 = scmp.eq.s32.totalorder %s34, 5
      %p240 = scmp.ne.s32.totalorder %s235, %s237
      %p241 = scmp.eq.s32.totalorder %s34, 0
      %p242 = por %p240, %p241
      %p243 = scmp.ne.s32.totalorder %s235, %s237
      %p244 = scmp.eq.s32.totalorder %s39, 5
      %p245 = por %p243, %p244
      %p246 = scmp.ne.s32.totalorder %s237, %s238
      %p247 = scmp.eq.s32.totalorder %s39, 0
      %p248 = por %p246, %p247
      %p249 = scmp.ne.s32.totalorder %s237, %s238
      %p250 = scmp.eq.s32.totalorder %s40, 5
      %p251 = por %p249, %p250
      %p253 = scmp.ne.s32.totalorder %s238, %s252
      %p254 = scmp.eq.s32.totalorder %s40, 0
      %p255 = por %p253, %p254
      %s257 = sadd.s32 %s256, 1
      %p260 = scmp.eq.s32.totalorder %s34, 5
      %p261 = scmp.ne.s32.totalorder %s256, %s258
      %p262 = scmp.eq.s32.totalorder %s34, 0
      %p263 = por %p261, %p262
      %p264 = scmp.ne.s32.totalorder %s256, %s258
      %p265 = scmp.eq.s32.totalorder %s39, 5
      %p266 = por %p264, %p265
      %p267 = scmp.ne.s32.totalorder %s258, %s259
      %p268 = scmp.eq.s32.totalorder %s39, 0
      %p269 = por %p267, %p268
      %p270 = scmp.ne.s32.totalorder %s258, %s259
      %p271 = scmp.eq.s32.totalorder %s40, 5
      %p272 = por %p270, %p271
      %p274 = scmp.ne.s32.totalorder %s259, %s273
      %p275 = scmp.eq.s32.totalorder %s40, 0
      %p276 = por %p274, %p275
      %s278 = sadd.s32 %s277, 1
      %p281 = scmp.eq.s32.totalorder %s34, 5
      %p282 = scmp.ne.s32.totalorder %s277, %s279
      %p283 = scmp.eq.s32.totalorder %s34, 0
      %p284 = por %p282, %p283
      %p285 = scmp.ne.s32.totalorder %s277, %s279
      %p286 = scmp.eq.s32.totalorder %s39, 5
      %p287 = por %p285, %p286
      %p288 = scmp.ne.s32.totalorder %s279, %s280
      %p289 = scmp.eq.s32.totalorder %s39, 0
      %p290 = por %p288, %p289
      %p291 = scmp.ne.s32.totalorder %s279, %s280
      %p292 = scmp.eq.s32.totalorder %s40, 5
      %p293 = por %p291, %p292
      %p295 = scmp.ne.s32.totalorder %s280, %s294
      %p296 = scmp.eq.s32.totalorder %s40, 0
      %p297 = por %p295, %p296
      %s298 = ssub.s32 %s41, %s53
      %p299 = scmp.eq.s32.totalorder %s298, 0
      %s301 = sadd.s32 %s300, 1
      %s302 = scalar_select %p299, %s300, %s301
      %p305 = pneg %p299
      %p306 = scmp.eq.s32.totalorder %s34, 5
      %p307 = por %p305, %p306
      %p308 = scmp.ne.s32.totalorder %s300, %s303
      %p309 = scmp.eq.s32.totalorder %s34, 0
      %p310 = por %p308, %p309
      %p311 = scmp.ne.s32.totalorder %s300, %s303
      %p312 = scmp.eq.s32.totalorder %s39, 5
      %p313 = por %p311, %p312
      %p314 = scmp.ne.s32.totalorder %s303, %s304
      %p315 = scmp.eq.s32.totalorder %s39, 0
      %p316 = por %p314, %p315
      %p317 = scmp.ne.s32.totalorder %s303, %s304
      %p318 = scmp.eq.s32.totalorder %s40, 5
      %p319 = por %p317, %p318
      %p321 = scmp.ne.s32.totalorder %s304, %s320
      %p322 = scmp.eq.s32.totalorder %s40, 0
      %p323 = por %p321, %p322
      %p324 = scmp.le.s32.totalorder 1, %s34
      %p325 = scmp.lt.s32.totalorder %s34, 7
      %p326 = pnand %p324, %p325
      %p327 = pneg %p326
      // Predicated region
      $region9: #{_node_update.1} parent=5 // pred_check
        _
      $region10: #{_node_update.1} parent=5 // pred_check_branch
        %329 = sbr.rel (%p326) target = $region12
      $region11: #{_node_update.1} parent=5 // pred_region
        %s330 = ssub.s32 %s34, 1
        // Predicated region
        $region13: #{_node_update.1} parent=11 // pred_check
          %p331 = pneg %p67
        $region14: #{_node_update.1} parent=11 // pred_check_branch
          %333 = sbr.rel (%p331) target = $region16
        $region15: #{_node_update.1} parent=11 // pred_region
          %s335 = ssub.s32 2048, 2048
          %336 = vsyncadd [#allocation6], %s335
          %s337 = sshll.u32 [#allocation5], 4
          %s338 = int_to_ptr.vmem [resolvable:$true] %s337
          %343 = dma.hbm_to_vmem [thread:$0]  %s1, 2048, %s338, [#allocation6], 64, 64, 4
        $region16: #{_node_update.1} parent=11 // pred_fallthru
          _
        // Predicated region
        $region17: #{_node_update.1} parent=11 // pred_check
          %p344 = pneg %p248
        $region18: #{_node_update.1} parent=11 // pred_check_branch
          %346 = sbr.rel (%p344) target = $region20
        $region19: #{_node_update.1} parent=11 // pred_region
          %s348 = ssub.s32 1024, 1024
          %349 = vsyncadd [#allocation15], %s348
          %s350 = sshll.u32 [#allocation14], 4
          %s351 = int_to_ptr.vmem [resolvable:$true] %s350
          %356 = dma.hbm_to_vmem [thread:$0]  %s8, 1024, %s351, [#allocation15], 64, 64, 4
        $region20: #{_node_update.1} parent=11 // pred_fallthru
          _
        // Predicated region
        $region21: #{_node_update.1} parent=11 // pred_check
          %p357 = pneg %p269
        $region22: #{_node_update.1} parent=11 // pred_check_branch
          %359 = sbr.rel (%p357) target = $region24
        $region23: #{_node_update.1} parent=11 // pred_region
          _
        $region24: #{_node_update.1} parent=11 // pred_fallthru
          _
        // Predicated region
        $region25: #{_node_update.1} parent=11 // pred_check
          %p360 = pneg %p290
        $region26: #{_node_update.1} parent=11 // pred_check_branch
          %362 = sbr.rel (%p360) target = $region28
        $region27: #{_node_update.1} parent=11 // pred_region
          _
        $region28: #{_node_update.1} parent=11 // pred_fallthru
          _
      $region12: #{_node_update.1} parent=5 // pred_fallthru
        _
      %p363 = scmp.lt.s32.totalorder %s34, 6
      // Predicated region
      $region29: #{_node_update.1} parent=5 // pred_check
        %p364 = pneg %p363
      $region30: #{_node_update.1} parent=5 // pred_check_branch
        %366 = sbr.rel (%p364) target = $region32
      $region31: #{_node_update.1} parent=5 // pred_region
        // Predicated region
        $region33: #{_node_update.1} parent=31 // pred_check
          %p367 = pneg %p87
        $region34: #{_node_update.1} parent=31 // pred_check_branch
          %369 = sbr.rel (%p367) target = $region36
        $region35: #{_node_update.1} parent=31 // pred_region
          %s370 = sand.u32 %s34, 1
          %s371 = scalar_lea.sflag [#allocation9], %s370
          %s372 = sand.u32 %s77, 1
          %s373 = smul.addr %s372, 64
          %s374 = scalar_lea.vmem [#allocation8], %s373
          %s375 = smul.u32 16, %s41
          %s377 = ssub.s32 1024, 1024
          %378 = vsyncadd %s371, %s377
          %s379 = smul.addr %s375, 64
          %s380 = scalar_lea.hbm %s2, %s379
          %s381 = sshll.u32 %s374, 4
          %s382 = int_to_ptr.vmem [resolvable:$true] %s381
          %387 = dma.hbm_to_vmem [thread:$0]  %s380, 1024, %s382, %s371, 64, 64, 4
        $region36: #{_node_update.1} parent=31 // pred_fallthru
          _
        // Predicated region
        $region37: #{_node_update.1} parent=31 // pred_check
          %p388 = pneg %p113
        $region38: #{_node_update.1} parent=31 // pred_check_branch
          %390 = sbr.rel (%p388) target = $region40
        $region39: #{_node_update.1} parent=31 // pred_region
          %s391 = sand.u32 %s34, 1
          %s392 = scalar_lea.sflag [#allocation9], %s391
          %s393 = sand.u32 %s103, 1
          %s394 = smul.addr %s393, 128
          %s395 = scalar_lea.vmem [#allocation10], %s394
          %s396 = smul.u32 32, %s42
          %s398 = ssub.s32 2048, 2048
          %399 = vsyncadd %s392, %s398
          %s400 = smul.addr %s396, 64
          %s401 = scalar_lea.hbm %s3, %s400
          %s402 = sshll.u32 %s395, 4
          %s403 = int_to_ptr.vmem [resolvable:$true] %s402
          %408 = dma.hbm_to_vmem [thread:$0]  %s401, 2048, %s403, %s392, 64, 64, 4
        $region40: #{_node_update.1} parent=31 // pred_fallthru
          _
        // Predicated region
        $region41: #{_node_update.1} parent=31 // pred_check
          %p409 = pneg %p139
        $region42: #{_node_update.1} parent=31 // pred_check_branch
          %411 = sbr.rel (%p409) target = $region44
        $region43: #{_node_update.1} parent=31 // pred_region
          %s412 = smul.u32 32, %s42
          %p413 = scmp.lt.s32.totalorder %s412, 95
          %s414 = scalar_select %p413, %s412, 95
          %s415 = smul.addr %s414, 2
          %s416 = smul.addr %s415, 4
          %s417 = scalar_lea.vmem %s4, %s416
          %s418 = smul.u32 32, %s42
        $region44: #{_node_update.1} parent=31 // pred_fallthru
          _
        // Predicated region
        $region45: #{_node_update.1} parent=31 // pred_check
          %p419 = pneg %p167
        $region46: #{_node_update.1} parent=31 // pred_check_branch
          %421 = sbr.rel (%p419) target = $region48
        $region47: #{_node_update.1} parent=31 // pred_region
          %s422 = sand.u32 %s34, 1
          %s423 = scalar_lea.sflag [#allocation12], %s422
          %s424 = sand.u32 %s157, 1
          %s425 = smul.addr %s424, 128
          %s426 = scalar_lea.vmem [#allocation11], %s425
          %s427 = smul.u32 16, %s41
          %s428 = smul.u32 2, %s42
          %s430 = ssub.s32 2048, 2048
          %431 = vsyncadd %s423, %s430
          %s432 = smul.addr %s427, 6
          %s433 = sadd.s32 %s428, %s432
          %s434 = smul.addr %s433, 64
          %s435 = scalar_lea.hbm %s5, %s434
          %s436 = sshll.u32 %s426, 4
          %s437 = int_to_ptr.vmem [resolvable:$true] %s436
          %442 = dma.hbm_to_vmem [thread:$0]  %s435, 2048, %s437, %s423, 384, 128, 8
        $region48: #{_node_update.1} parent=31 // pred_fallthru
          _
        // Predicated region
        $region49: #{_node_update.1} parent=31 // pred_check
          %p443 = pneg %p193
        $region50: #{_node_update.1} parent=31 // pred_check_branch
          %445 = sbr.rel (%p443) target = $region52
        $region51: #{_node_update.1} parent=31 // pred_region
          %s446 = smul.u32 32, %s42
          %p447 = scmp.lt.s32.totalorder %s446, 95
          %s448 = scalar_select %p447, %s446, 95
          %s449 = smul.addr %s448, 8
          %s450 = scalar_lea.vmem %s6, %s449
          %s451 = smul.u32 32, %s42
        $region52: #{_node_update.1} parent=31 // pred_fallthru
          _
        // Predicated region
        $region53: #{_node_update.1} parent=31 // pred_check
          %p452 = pneg %p221
        $region54: #{_node_update.1} parent=31 // pred_check_branch
          %454 = sbr.rel (%p452) target = $region56
        $region55: #{_node_update.1} parent=31 // pred_region
          %s455 = sand.u32 %s34, 1
          %s456 = scalar_lea.sflag [#allocation12], %s455
          %s457 = sand.u32 %s211, 1
          %s458 = smul.addr %s457, 64
          %s459 = scalar_lea.vmem [#allocation13], %s458
          %s460 = sld [smem:[#allocation4 + %s42]]
          %s462 = ssub.s32 1024, 1024
          %463 = vsyncadd %s456, %s462
          %s464 = smul.addr %s460, 16
          %s465 = smul.addr %s464, 64
          %s466 = scalar_lea.hbm %s7, %s465
          %s467 = sshll.u32 %s459, 4
          %s468 = int_to_ptr.vmem [resolvable:$true] %s467
          %473 = dma.hbm_to_vmem [thread:$0]  %s466, 1024, %s468, %s456, 64, 64, 4
        $region56: #{_node_update.1} parent=31 // pred_fallthru
          _
      $region32: #{_node_update.1} parent=5 // pred_fallthru
        _
      %p474 = scmp.le.s32.totalorder 1, %s34
      %p475 = scmp.lt.s32.totalorder %s34, 7
      %p476 = pnand %p474, %p475
      %p477 = pneg %p476
      // Predicated region
      $region57: #{_node_update.1} parent=5 // pred_check
        _
      $region58: #{_node_update.1} parent=5 // pred_check_branch
        %479 = sbr.rel (%p476) target = $region60
      $region59: #{_node_update.1} parent=5 // pred_region
        %s480 = ssub.s32 %s34, 1
        // Predicated region
        $region61: #{_node_update.1} parent=59 // pred_check
          %p481 = pneg %p67
        $region62: #{_node_update.1} parent=59 // pred_check_branch
          %483 = sbr.rel (%p481) target = $region64
        $region63: #{_node_update.1} parent=59 // pred_region
          %484 = dma.done [#allocation6], 2048
        $region64: #{_node_update.1} parent=59 // pred_fallthru
          _
        %s485 = sand.u32 %s39, 1
        %s486 = scalar_lea.sflag [#allocation9], %s485
        %s487 = sand.u32 %s80, 1
        %s488 = smul.addr %s487, 64
        %s489 = scalar_lea.vmem [#allocation8], %s488
        // Predicated region
        $region65: #{_node_update.1} parent=59 // pred_check
          %p490 = pneg %p93
        $region66: #{_node_update.1} parent=59 // pred_check_branch
          %492 = sbr.rel (%p490) target = $region68
        $region67: #{_node_update.1} parent=59 // pred_region
          %493 = dma.done %s486, 1024
        $region68: #{_node_update.1} parent=59 // pred_fallthru
          _
        %s494 = sand.u32 %s39, 1
        %s495 = scalar_lea.sflag [#allocation9], %s494
        %s496 = sand.u32 %s106, 1
        %s497 = smul.addr %s496, 128
        %s498 = scalar_lea.vmem [#allocation10], %s497
        // Predicated region
        $region69: #{_node_update.1} parent=59 // pred_check
          %p499 = pneg %p119
        $region70: #{_node_update.1} parent=59 // pred_check_branch
          %501 = sbr.rel (%p499) target = $region72
        $region71: #{_node_update.1} parent=59 // pred_region
          %502 = dma.done %s495, 2048
        $region72: #{_node_update.1} parent=59 // pred_fallthru
          _
        %s503 = sand.u32 %s39, 1
        %s504 = scalar_lea.sflag [#allocation12], %s503
        %s505 = sand.u32 %s160, 1
        %s506 = smul.addr %s505, 128
        %s507 = scalar_lea.vmem [#allocation11], %s506
        // Predicated region
        $region73: #{_node_update.1} parent=59 // pred_check
          %p508 = pneg %p173
        $region74: #{_node_update.1} parent=59 // pred_check_branch
          %510 = sbr.rel (%p508) target = $region76
        $region75: #{_node_update.1} parent=59 // pred_region
          %511 = dma.done %s504, 2048
        $region76: #{_node_update.1} parent=59 // pred_fallthru
          _
        %s512 = sand.u32 %s39, 1
        %s513 = scalar_lea.sflag [#allocation12], %s512
        %s514 = sand.u32 %s214, 1
        %s515 = smul.addr %s514, 64
        %s516 = scalar_lea.vmem [#allocation13], %s515
        // Predicated region
        $region77: #{_node_update.1} parent=59 // pred_check
          %p517 = pneg %p227
        $region78: #{_node_update.1} parent=59 // pred_check_branch
          %519 = sbr.rel (%p517) target = $region80
        $region79: #{_node_update.1} parent=59 // pred_region
          %520 = dma.done %s513, 1024
        $region80: #{_node_update.1} parent=59 // pred_fallthru
          _
        // Predicated region
        $region81: #{_node_update.1} parent=59 // pred_check
          %p521 = pneg %p248
        $region82: #{_node_update.1} parent=59 // pred_check_branch
          %523 = sbr.rel (%p521) target = $region84
        $region83: #{_node_update.1} parent=59 // pred_region
          %524 = dma.done [#allocation15], 1024
        $region84: #{_node_update.1} parent=59 // pred_fallthru
          _
        %p525 = pneg %p67
        %p526 = pneg %p64
        %s527 = sand.u32 %s39, 1
        %s528 = scalar_lea.sflag [#allocation9], %s527
        %s529 = sand.u32 %s80, 1
        %s530 = smul.addr %s529, 64
        %s531 = scalar_lea.vmem [#allocation8], %s530
        %p532 = pneg %p93
        %p533 = pneg %p90
        %s534 = sand.u32 %s39, 1
        %s535 = scalar_lea.sflag [#allocation9], %s534
        %s536 = sand.u32 %s106, 1
        %s537 = smul.addr %s536, 128
        %s538 = scalar_lea.vmem [#allocation10], %s537
        %p539 = pneg %p119
        %p540 = pneg %p116
        %s541 = smul.u32 32, %s44
        %p542 = scmp.lt.s32.totalorder %s541, 95
        %s543 = scalar_select %p542, %s541, 95
        %s544 = smul.addr %s543, 2
        %s545 = smul.addr %s544, 4
        %s546 = scalar_lea.vmem %s4, %s545
        %p547 = pneg %p145
        %p548 = pneg %p142
        %s549 = sand.u32 %s39, 1
        %s550 = scalar_lea.sflag [#allocation12], %s549
        %s551 = sand.u32 %s160, 1
        %s552 = smul.addr %s551, 128
        %s553 = scalar_lea.vmem [#allocation11], %s552
        %p554 = pneg %p173
        %p555 = pneg %p170
        %s556 = smul.u32 32, %s44
        %p557 = scmp.lt.s32.totalorder %s556, 95
        %s558 = scalar_select %p557, %s556, 95
        %s559 = smul.addr %s558, 8
        %s560 = scalar_lea.vmem %s6, %s559
        %p561 = pneg %p199
        %p562 = pneg %p196
        %s563 = sand.u32 %s39, 1
        %s564 = scalar_lea.sflag [#allocation12], %s563
        %s565 = sand.u32 %s214, 1
        %s566 = smul.addr %s565, 64
        %s567 = scalar_lea.vmem [#allocation13], %s566
        %p568 = pneg %p227
        %p569 = pneg %p224
        %p570 = pneg %p248
        %p571 = pneg %p245
        %p572 = pneg %p269
        %p573 = pneg %p266
        %p574 = pneg %p290
        %p575 = pneg %p287
        %p576 = pneg %p316
        %p577 = pneg %p313
        %s578 = sand.u32 %s303, 1
        %s579 = scalar_lea.sflag [#allocation7], %s578
        %s580 = sand.u32 %s303, 1
        %s581 = smul.addr %s580, 128
        %s582 = scalar_lea.vmem [#allocation16], %s581
        %s583 = smul.u32 16, %s43
        %s584 = smul.u32 32, %s44
        %s585 = smul.u32 32, %s44
        %p586 = scmp.lt.s32.totalorder %s585, 95
        %s587 = scalar_select %p586, %s585, 95
        %s588 = smul.addr %s587, 2
        %s589 = smul.addr %s588, 4
        %s590 = scalar_lea.vmem %s4, %s589
        %s591 = smul.u32 32, %s44
        %s592 = smul.u32 16, %s43
        %s593 = smul.u32 2, %s44
        %s594 = smul.u32 32, %s44
        %p595 = scmp.lt.s32.totalorder %s594, 95
        %s596 = scalar_select %p595, %s594, 95
        %s597 = smul.addr %s596, 8
        %s598 = scalar_lea.vmem %s6, %s597
        %s599 = smul.u32 32, %s44
        %s600 = sld [smem:[#allocation4 + %s44]]
        %s601 = smul.u32 16, %s43
        %p603 = scmp.eq.s32.totalorder %s44, 0
        // Predicated region
        $region85: #{_node_update.1} parent=59 // pred_check
          %p604 = pneg %p603
        $region86: #{_node_update.1} parent=59 // pred_check_branch
          %606 = sbr.rel (%p604) target = $region88
        $region87: #{_node_update.1} parent=59 // pred_region
          %607 = vst [vmem:[#allocation2] sm:$0xff] 0.0
          %608 = vst [vmem:[#allocation2 + $0x8] sm:$0xff] 0.0
          %609 = vst [vmem:[#allocation2 + $0x10] sm:$0xff] 0.0
          %610 = vst [vmem:[#allocation2 + $0x18] sm:$0xff] 0.0
          %611 = vst [vmem:[#allocation2 + $0x20] sm:$0xff] 0.0
          %612 = vst [vmem:[#allocation2 + $0x28] sm:$0xff] 0.0
          %613 = vst [vmem:[#allocation2 + $0x30] sm:$0xff] 0.0
          %614 = vst [vmem:[#allocation2 + $0x38] sm:$0xff] 0.0
          %615 = vst [vmem:[#allocation2 + $0x40] sm:$0xff] 0.0
          %616 = vst [vmem:[#allocation2 + $0x48] sm:$0xff] 0.0
          %617 = vst [vmem:[#allocation2 + $0x50] sm:$0xff] 0.0
          %618 = vst [vmem:[#allocation2 + $0x58] sm:$0xff] 0.0
          %619 = vst [vmem:[#allocation2 + $0x60] sm:$0xff] 0.0
          %620 = vst [vmem:[#allocation2 + $0x68] sm:$0xff] 0.0
          %621 = vst [vmem:[#allocation2 + $0x70] sm:$0xff] 0.0
          %622 = vst [vmem:[#allocation2 + $0x78] sm:$0xff] 0.0
        $region88: #{_node_update.1} parent=59 // pred_fallthru
          _
        %v623 = vld [vmem:[%s590] sm:$0xff]
        %v624 = vld [vmem:[%s590 + $0x8] sm:$0xff]
        %v625 = vld [vmem:[%s590 + $0x10] sm:$0xff]
        %v626 = vld [vmem:[%s590 + $0x18] sm:$0xff]
        %v627 = vld [vmem:[%s590 + $0x20] sm:$0xff]
        %v628 = vld [vmem:[%s590 + $0x28] sm:$0xff]
        %v629 = vld [vmem:[%s590 + $0x30] sm:$0xff]
        %v630 = vld [vmem:[%s590 + $0x38] sm:$0xff]
        %v631 = vld [vmem:[%s590 + $0x40] sm:$0xff]
        %v632 = vld [vmem:[%s590 + $0x48] sm:$0xff]
        %v633 = vld [vmem:[%s590 + $0x50] sm:$0xff]
        %v634 = vld [vmem:[%s590 + $0x58] sm:$0xff]
        %v635 = vld [vmem:[%s590 + $0x60] sm:$0xff]
        %v636 = vld [vmem:[%s590 + $0x68] sm:$0xff]
        %v637 = vld [vmem:[%s590 + $0x70] sm:$0xff]
        %v638 = vld [vmem:[%s590 + $0x78] sm:$0xff]
        %v639 = vld [vmem:[%s590 + $0x80] sm:$0xff]
        %v640 = vld [vmem:[%s590 + $0x88] sm:$0xff]
        %v641 = vld [vmem:[%s590 + $0x90] sm:$0xff]
        %v642 = vld [vmem:[%s590 + $0x98] sm:$0xff]
        %v643 = vld [vmem:[%s590 + $0xa0] sm:$0xff]
        %v644 = vld [vmem:[%s590 + $0xa8] sm:$0xff]
        %v645 = vld [vmem:[%s590 + $0xb0] sm:$0xff]
        %v646 = vld [vmem:[%s590 + $0xb8] sm:$0xff]
        %v647 = vld [vmem:[%s590 + $0xc0] sm:$0xff]
        %v648 = vld [vmem:[%s590 + $0xc8] sm:$0xff]
        %v649 = vld [vmem:[%s590 + $0xd0] sm:$0xff]
        %v650 = vld [vmem:[%s590 + $0xd8] sm:$0xff]
        %v651 = vld [vmem:[%s590 + $0xe0] sm:$0xff]
        %v652 = vld [vmem:[%s590 + $0xe8] sm:$0xff]
        %v653 = vld [vmem:[%s590 + $0xf0] sm:$0xff]
        %v654 = vld [vmem:[%s590 + $0xf8] sm:$0xff]
        %v655 = vld [vmem:[#allocation5] sm:$0xf]
        %v656 = vld [vmem:[#allocation5 + $0x4] sm:$0xf]
        %v657 = vld [vmem:[#allocation5 + $0x8] sm:$0xf]
        %v658 = vld [vmem:[#allocation5 + $0xc] sm:$0xf]
        %v659 = vld [vmem:[#allocation5 + $0x10] sm:$0xf]
        %v660 = vld [vmem:[#allocation5 + $0x14] sm:$0xf]
        %v661 = vld [vmem:[#allocation5 + $0x18] sm:$0xf]
        %v662 = vld [vmem:[#allocation5 + $0x1c] sm:$0xf]
        %v663 = vld [vmem:[#allocation5 + $0x20] sm:$0xf]
        %v664 = vld [vmem:[#allocation5 + $0x24] sm:$0xf]
        %v665 = vld [vmem:[#allocation5 + $0x28] sm:$0xf]
        %v666 = vld [vmem:[#allocation5 + $0x2c] sm:$0xf]
        %v667 = vld [vmem:[#allocation5 + $0x30] sm:$0xf]
        %v668 = vld [vmem:[#allocation5 + $0x34] sm:$0xf]
        %v669 = vld [vmem:[#allocation5 + $0x38] sm:$0xf]
        %v670 = vld [vmem:[#allocation5 + $0x3c] sm:$0xf]
        %v671 = vld [vmem:[#allocation5 + $0x40] sm:$0xf]
        %v672 = vld [vmem:[#allocation5 + $0x44] sm:$0xf]
        %v673 = vld [vmem:[#allocation5 + $0x48] sm:$0xf]
        %v674 = vld [vmem:[#allocation5 + $0x4c] sm:$0xf]
        %v675 = vld [vmem:[#allocation5 + $0x50] sm:$0xf]
        %v676 = vld [vmem:[#allocation5 + $0x54] sm:$0xf]
        %v677 = vld [vmem:[#allocation5 + $0x58] sm:$0xf]
        %v678 = vld [vmem:[#allocation5 + $0x5c] sm:$0xf]
        %v679 = vld [vmem:[#allocation5 + $0x60] sm:$0xf]
        %v680 = vld [vmem:[#allocation5 + $0x64] sm:$0xf]
        %v681 = vld [vmem:[#allocation5 + $0x68] sm:$0xf]
        %v682 = vld [vmem:[#allocation5 + $0x6c] sm:$0xf]
        %v683 = vld [vmem:[#allocation5 + $0x70] sm:$0xf]
        %v684 = vld [vmem:[#allocation5 + $0x74] sm:$0xf]
        %v685 = vld [vmem:[#allocation5 + $0x78] sm:$0xf]
        %v686 = vld [vmem:[#allocation5 + $0x7c] sm:$0xf]
        %v719 = vunpack.c.l.b16 %v623
        %v720 = vunpack.c.h.b16 %v623
        %v721 = vunpack.c.l.b16 %v624
        %v722 = vunpack.c.h.b16 %v624
        %v723 = vunpack.c.l.b16 %v625
        %v724 = vunpack.c.h.b16 %v625
        %v725 = vunpack.c.l.b16 %v626
        %v726 = vunpack.c.h.b16 %v626
        %v727 = vunpack.c.l.b16 %v627
        %v728 = vunpack.c.h.b16 %v627
        %v729 = vunpack.c.l.b16 %v628
        %v730 = vunpack.c.h.b16 %v628
        %v731 = vunpack.c.l.b16 %v629
        %v732 = vunpack.c.h.b16 %v629
        %v733 = vunpack.c.l.b16 %v630
        %v734 = vunpack.c.h.b16 %v630
        %v735 = vunpack.c.l.b16 %v631
        %v736 = vunpack.c.h.b16 %v631
        %v737 = vunpack.c.l.b16 %v632
        %v738 = vunpack.c.h.b16 %v632
        %v739 = vunpack.c.l.b16 %v633
        %v740 = vunpack.c.h.b16 %v633
        %v741 = vunpack.c.l.b16 %v634
        %v742 = vunpack.c.h.b16 %v634
        %v743 = vunpack.c.l.b16 %v635
        %v744 = vunpack.c.h.b16 %v635
        %v745 = vunpack.c.l.b16 %v636
        %v746 = vunpack.c.h.b16 %v636
        %v747 = vunpack.c.l.b16 %v637
        %v748 = vunpack.c.h.b16 %v637
        %v749 = vunpack.c.l.b16 %v638
        %v750 = vunpack.c.h.b16 %v638
        %v751 = vunpack.c.l.b16 %v639
        %v752 = vunpack.c.h.b16 %v639
        %v753 = vunpack.c.l.b16 %v640
        %v754 = vunpack.c.h.b16 %v640
        %v755 = vunpack.c.l.b16 %v641
        %v756 = vunpack.c.h.b16 %v641
        %v757 = vunpack.c.l.b16 %v642
        %v758 = vunpack.c.h.b16 %v642
        %v759 = vunpack.c.l.b16 %v643
        %v760 = vunpack.c.h.b16 %v643
        %v761 = vunpack.c.l.b16 %v644
        %v762 = vunpack.c.h.b16 %v644
        %v763 = vunpack.c.l.b16 %v645
        %v764 = vunpack.c.h.b16 %v645
        %v765 = vunpack.c.l.b16 %v646
        %v766 = vunpack.c.h.b16 %v646
        %v767 = vunpack.c.l.b16 %v647
        %v768 = vunpack.c.h.b16 %v647
        %v769 = vunpack.c.l.b16 %v648
        %v770 = vunpack.c.h.b16 %v648
        %v771 = vunpack.c.l.b16 %v649
        %v772 = vunpack.c.h.b16 %v649
        %v773 = vunpack.c.l.b16 %v650
        %v774 = vunpack.c.h.b16 %v650
        %v775 = vunpack.c.l.b16 %v651
        %v776 = vunpack.c.h.b16 %v651
        %v777 = vunpack.c.l.b16 %v652
        %v778 = vunpack.c.h.b16 %v652
        %v779 = vunpack.c.l.b16 %v653
        %v780 = vunpack.c.h.b16 %v653
        %v781 = vunpack.c.l.b16 %v654
        %v782 = vunpack.c.h.b16 %v654
        %v783 = vpack.c.b16 %v721, %v719
        %v784 = vpack.c.b16 %v722, %v720
        %v785 = vpack.c.b16 %v725, %v723
        %v786 = vpack.c.b16 %v726, %v724
        %v787 = vpack.c.b16 %v729, %v727
        %v788 = vpack.c.b16 %v730, %v728
        %v789 = vpack.c.b16 %v733, %v731
        %v790 = vpack.c.b16 %v734, %v732
        %v791 = vpack.c.b16 %v737, %v735
        %v792 = vpack.c.b16 %v738, %v736
        %v793 = vpack.c.b16 %v741, %v739
        %v794 = vpack.c.b16 %v742, %v740
        %v795 = vpack.c.b16 %v745, %v743
        %v796 = vpack.c.b16 %v746, %v744
        %v797 = vpack.c.b16 %v749, %v747
        %v798 = vpack.c.b16 %v750, %v748
        %v799 = vpack.c.b16 %v753, %v751
        %v800 = vpack.c.b16 %v754, %v752
        %v801 = vpack.c.b16 %v757, %v755
        %v802 = vpack.c.b16 %v758, %v756
        %v803 = vpack.c.b16 %v761, %v759
        %v804 = vpack.c.b16 %v762, %v760
        %v805 = vpack.c.b16 %v765, %v763
        %v806 = vpack.c.b16 %v766, %v764
        %v807 = vpack.c.b16 %v769, %v767
        %v808 = vpack.c.b16 %v770, %v768
        %v809 = vpack.c.b16 %v773, %v771
        %v810 = vpack.c.b16 %v774, %v772
        %v811 = vpack.c.b16 %v777, %v775
        %v812 = vpack.c.b16 %v778, %v776
        %v813 = vpack.c.b16 %v781, %v779
        %v814 = vpack.c.b16 %v782, %v780
        %v879 = vunpack.c.l.b16 %v655
        %v880 = vunpack.c.l.b16 %v656
        %v881 = vunpack.c.l.b16 %v657
        %v882 = vunpack.c.l.b16 %v658
        %v883 = vunpack.c.l.b16 %v659
        %v884 = vunpack.c.l.b16 %v660
        %v885 = vunpack.c.l.b16 %v661
        %v886 = vunpack.c.l.b16 %v662
        %v887 = vunpack.c.l.b16 %v663
        %v888 = vunpack.c.l.b16 %v664
        %v889 = vunpack.c.l.b16 %v665
        %v890 = vunpack.c.l.b16 %v666
        %v891 = vunpack.c.l.b16 %v667
        %v892 = vunpack.c.l.b16 %v668
        %v893 = vunpack.c.l.b16 %v669
        %v894 = vunpack.c.l.b16 %v670
        %v895 = vunpack.c.l.b16 %v671
        %v896 = vunpack.c.l.b16 %v672
        %v897 = vunpack.c.l.b16 %v673
        %v898 = vunpack.c.l.b16 %v674
        %v899 = vunpack.c.l.b16 %v675
        %v900 = vunpack.c.l.b16 %v676
        %v901 = vunpack.c.l.b16 %v677
        %v902 = vunpack.c.l.b16 %v678
        %v903 = vunpack.c.l.b16 %v679
        %v904 = vunpack.c.l.b16 %v680
        %v905 = vunpack.c.l.b16 %v681
        %v906 = vunpack.c.l.b16 %v682
        %v907 = vunpack.c.l.b16 %v683
        %v908 = vunpack.c.l.b16 %v684
        %v909 = vunpack.c.l.b16 %v685
        %v910 = vunpack.c.l.b16 %v686
        %v911 = vpack.c.b16 %v880, %v879
        %v912 = vpack.c.b16 %v882, %v881
        %v913 = vpack.c.b16 %v884, %v883
        %v914 = vpack.c.b16 %v886, %v885
        %v915 = vpack.c.b16 %v888, %v887
        %v916 = vpack.c.b16 %v890, %v889
        %v917 = vpack.c.b16 %v892, %v891
        %v918 = vpack.c.b16 %v894, %v893
        %v919 = vpack.c.b16 %v896, %v895
        %v920 = vpack.c.b16 %v898, %v897
        %v921 = vpack.c.b16 %v900, %v899
        %v922 = vpack.c.b16 %v902, %v901
        %v923 = vpack.c.b16 %v904, %v903
        %v924 = vpack.c.b16 %v906, %v905
        %v925 = vpack.c.b16 %v908, %v907
        %v926 = vpack.c.b16 %v910, %v909
        %943 = vmatprep.subr.bf16.mxu0 0
        %944 = vmatpush1.bf16.msra.mxu0 %v911
        %945 = vmatprep.subr.bf16.mxu0 0
        %946 = vmatpush1.bf16.msra.mxu0 %v912
        %947 = vmatprep.subr.bf16.mxu0 0
        %948 = vmatpush1.bf16.msra.mxu0 %v913
        %949 = vmatprep.subr.bf16.mxu0 0
        %950 = vmatpush1.bf16.msra.mxu0 %v914
        %951 = vmatprep.subr.bf16.mxu0 0
        %952 = vmatpush1.bf16.msra.mxu0 %v915
        %953 = vmatprep.subr.bf16.mxu0 0
        %954 = vmatpush1.bf16.msra.mxu0 %v916
        %955 = vmatprep.subr.bf16.mxu0 0
        %956 = vmatpush1.bf16.msra.mxu0 %v917
        %957 = vmatprep.subr.bf16.mxu0 0
        %958 = vmatpush1.bf16.msra.mxu0 %v918
        %959 = vmatprep.subr.bf16.mxu0 0
        %960 = vmatpush1.bf16.msra.mxu0 %v919
        %961 = vmatprep.subr.bf16.mxu0 0
        %962 = vmatpush1.bf16.msra.mxu0 %v920
        %963 = vmatprep.subr.bf16.mxu0 0
        %964 = vmatpush1.bf16.msra.mxu0 %v921
        %965 = vmatprep.subr.bf16.mxu0 0
        %966 = vmatpush1.bf16.msra.mxu0 %v922
        %967 = vmatprep.subr.bf16.mxu0 0
        %968 = vmatpush1.bf16.msra.mxu0 %v923
        %969 = vmatprep.subr.bf16.mxu0 0
        %970 = vmatpush1.bf16.msra.mxu0 %v924
        %971 = vmatprep.subr.bf16.mxu0 0
        %972 = vmatpush1.bf16.msra.mxu0 %v925
        %973 = vmatprep.subr.bf16.mxu0 0
        %974 = vmatpush1.bf16.msra.mxu0 %v926
        %975 = vmatprep.mubr.bf16.mxu0 %v784
        %976 = vmatmul.mubr.bf16.gmra.mrb[0].mxu0 %v783
        %v977 = vpop.f32.mrb[0].mxu0
        %v978 = vadd.f32 0.0, %v977
        %v979 = vpop.f32.mrb[0].mxu0
        %v980 = vpop.f32.mrb[0].mxu0
        %v981 = vadd.f32 0.0, %v980
        %v982 = vpop.f32.mrb[0].mxu0
        %983 = vmatprep.mubr.bf16.mxu0 %v786
        %984 = vmatmul.mubr.bf16.gmra.mrb[0].mxu0 %v785
        %v985 = vpop.f32.mrb[0].mxu0
        %v986 = vadd.f32 0.0, %v985
        %v987 = vpop.f32.mrb[0].mxu0
        %v988 = vpop.f32.mrb[0].mxu0
        %v989 = vadd.f32 0.0, %v988
        %v990 = vpop.f32.mrb[0].mxu0
        %991 = vmatprep.mubr.bf16.mxu0 %v788
        %992 = vmatmul.mubr.bf16.gmra.mrb[0].mxu0 %v787
        %v993 = vpop.f32.mrb[0].mxu0
        %v994 = vadd.f32 0.0, %v993
        %v995 = vpop.f32.mrb[0].mxu0
        %v996 = vpop.f32.mrb[0].mxu0
        %v997 = vadd.f32 0.0, %v996
        %v998 = vpop.f32.mrb[0].mxu0
        %999 = vmatprep.mubr.bf16.mxu0 %v790
        %1000 = vmatmul.mubr.bf16.gmra.mrb[0].mxu0 %v789
        %v1001 = vpop.f32.mrb[0].mxu0
        %v1002 = vadd.f32 0.0, %v1001
        %v1003 = vpop.f32.mrb[0].mxu0
        %v1004 = vpop.f32.mrb[0].mxu0
        %v1005 = vadd.f32 0.0, %v1004
        %v1006 = vpop.f32.mrb[0].mxu0
        %1007 = vmatprep.mubr.bf16.mxu0 %v792
        %1008 = vmatmul.mubr.bf16.gmra.mrb[0].mxu0 %v791
        %v1009 = vpop.f32.mrb[0].mxu0
        %v1010 = vadd.f32 0.0, %v1009
        %v1011 = vpop.f32.mrb[0].mxu0
        %v1012 = vpop.f32.mrb[0].mxu0
        %v1013 = vadd.f32 0.0, %v1012
        %v1014 = vpop.f32.mrb[0].mxu0
        %1015 = vmatprep.mubr.bf16.mxu0 %v794
        %1016 = vmatmul.mubr.bf16.gmra.mrb[0].mxu0 %v793
        %v1017 = vpop.f32.mrb[0].mxu0
        %v1018 = vadd.f32 0.0, %v1017
        %v1019 = vpop.f32.mrb[0].mxu0
        %v1020 = vpop.f32.mrb[0].mxu0
        %v1021 = vadd.f32 0.0, %v1020
        %v1022 = vpop.f32.mrb[0].mxu0
        %1023 = vmatprep.mubr.bf16.mxu0 %v796
        %1024 = vmatmul.mubr.bf16.gmra.mrb[0].mxu0 %v795
        %v1025 = vpop.f32.mrb[0].mxu0
        %v1026 = vadd.f32 0.0, %v1025
        %v1027 = vpop.f32.mrb[0].mxu0
        %v1028 = vpop.f32.mrb[0].mxu0
        %v1029 = vadd.f32 0.0, %v1028
        %v1030 = vpop.f32.mrb[0].mxu0
        %1031 = vmatprep.mubr.bf16.mxu0 %v798
        %1032 = vmatmul.mubr.bf16.gmra.mrb[0].mxu0 %v797
        %v1033 = vpop.f32.mrb[0].mxu0
        %v1034 = vadd.f32 0.0, %v1033
        %v1035 = vpop.f32.mrb[0].mxu0
        %v1036 = vpop.f32.mrb[0].mxu0
        %v1037 = vadd.f32 0.0, %v1036
        %v1038 = vpop.f32.mrb[0].mxu0
        %1039 = vmatprep.mubr.bf16.mxu0 %v800
        %1040 = vmatmul.mubr.bf16.gmra.mrb[0].mxu0 %v799
        %v1041 = vpop.f32.mrb[0].mxu0
        %v1042 = vadd.f32 0.0, %v1041
        %v1043 = vpop.f32.mrb[0].mxu0
        %v1044 = vpop.f32.mrb[0].mxu0
        %v1045 = vadd.f32 0.0, %v1044
        %v1046 = vpop.f32.mrb[0].mxu0
        %1047 = vmatprep.mubr.bf16.mxu0 %v802
        %1048 = vmatmul.mubr.bf16.gmra.mrb[0].mxu0 %v801
        %v1049 = vpop.f32.mrb[0].mxu0
        %v1050 = vadd.f32 0.0, %v1049
        %v1051 = vpop.f32.mrb[0].mxu0
        %v1052 = vpop.f32.mrb[0].mxu0
        %v1053 = vadd.f32 0.0, %v1052
        %v1054 = vpop.f32.mrb[0].mxu0
        %1055 = vmatprep.mubr.bf16.mxu0 %v804
        %1056 = vmatmul.mubr.bf16.gmra.mrb[0].mxu0 %v803
        %v1057 = vpop.f32.mrb[0].mxu0
        %v1058 = vadd.f32 0.0, %v1057
        %v1059 = vpop.f32.mrb[0].mxu0
        %v1060 = vpop.f32.mrb[0].mxu0
        %v1061 = vadd.f32 0.0, %v1060
        %v1062 = vpop.f32.mrb[0].mxu0
        %1063 = vmatprep.mubr.bf16.mxu0 %v806
        %1064 = vmatmul.mubr.bf16.gmra.mrb[0].mxu0 %v805
        %v1065 = vpop.f32.mrb[0].mxu0
        %v1066 = vadd.f32 0.0, %v1065
        %v1067 = vpop.f32.mrb[0].mxu0
        %v1068 = vpop.f32.mrb[0].mxu0
        %v1069 = vadd.f32 0.0, %v1068
        %v1070 = vpop.f32.mrb[0].mxu0
        %1071 = vmatprep.mubr.bf16.mxu0 %v808
        %1072 = vmatmul.mubr.bf16.gmra.mrb[0].mxu0 %v807
        %v1073 = vpop.f32.mrb[0].mxu0
        %v1074 = vadd.f32 0.0, %v1073
        %v1075 = vpop.f32.mrb[0].mxu0
        %v1076 = vpop.f32.mrb[0].mxu0
        %v1077 = vadd.f32 0.0, %v1076
        %v1078 = vpop.f32.mrb[0].mxu0
        %1079 = vmatprep.mubr.bf16.mxu0 %v810
        %1080 = vmatmul.mubr.bf16.gmra.mrb[0].mxu0 %v809
        %v1081 = vpop.f32.mrb[0].mxu0
        %v1082 = vadd.f32 0.0, %v1081
        %v1083 = vpop.f32.mrb[0].mxu0
        %v1084 = vpop.f32.mrb[0].mxu0
        %v1085 = vadd.f32 0.0, %v1084
        %v1086 = vpop.f32.mrb[0].mxu0
        %1087 = vmatprep.mubr.bf16.mxu0 %v812
        %1088 = vmatmul.mubr.bf16.gmra.mrb[0].mxu0 %v811
        %v1089 = vpop.f32.mrb[0].mxu0
        %v1090 = vadd.f32 0.0, %v1089
        %v1091 = vpop.f32.mrb[0].mxu0
        %v1092 = vpop.f32.mrb[0].mxu0
        %v1093 = vadd.f32 0.0, %v1092
        %v1094 = vpop.f32.mrb[0].mxu0
        %1095 = vmatprep.mubr.bf16.mxu0 %v814
        %1096 = vmatmul.mubr.bf16.gmra.mrb[0].mxu0 %v813
        %v1097 = vpop.f32.mrb[0].mxu0
        %v1098 = vadd.f32 0.0, %v1097
        %v1099 = vpop.f32.mrb[0].mxu0
        %v1100 = vpop.f32.mrb[0].mxu0
        %v1101 = vadd.f32 0.0, %v1100
        %v1102 = vpop.f32.mrb[0].mxu0
        %1103 = vdwg.mxu0
        %v1104 = vld [vmem:[%s498] sm:$0xf]
        %v1105 = vld [vmem:[%s498 + $0x4] sm:$0xf]
        %v1106 = vld [vmem:[%s498 + $0x8] sm:$0xf]
        %v1107 = vld [vmem:[%s498 + $0xc] sm:$0xf]
        %v1108 = vld [vmem:[%s498 + $0x10] sm:$0xf]
        %v1109 = vld [vmem:[%s498 + $0x14] sm:$0xf]
        %v1110 = vld [vmem:[%s498 + $0x18] sm:$0xf]
        %v1111 = vld [vmem:[%s498 + $0x1c] sm:$0xf]
        %v1112 = vld [vmem:[%s498 + $0x20] sm:$0xf]
        %v1113 = vld [vmem:[%s498 + $0x24] sm:$0xf]
        %v1114 = vld [vmem:[%s498 + $0x28] sm:$0xf]
        %v1115 = vld [vmem:[%s498 + $0x2c] sm:$0xf]
        %v1116 = vld [vmem:[%s498 + $0x30] sm:$0xf]
        %v1117 = vld [vmem:[%s498 + $0x34] sm:$0xf]
        %v1118 = vld [vmem:[%s498 + $0x38] sm:$0xf]
        %v1119 = vld [vmem:[%s498 + $0x3c] sm:$0xf]
        %v1120 = vld [vmem:[%s498 + $0x40] sm:$0xf]
        %v1121 = vld [vmem:[%s498 + $0x44] sm:$0xf]
        %v1122 = vld [vmem:[%s498 + $0x48] sm:$0xf]
        %v1123 = vld [vmem:[%s498 + $0x4c] sm:$0xf]
        %v1124 = vld [vmem:[%s498 + $0x50] sm:$0xf]
        %v1125 = vld [vmem:[%s498 + $0x54] sm:$0xf]
        %v1126 = vld [vmem:[%s498 + $0x58] sm:$0xf]
        %v1127 = vld [vmem:[%s498 + $0x5c] sm:$0xf]
        %v1128 = vld [vmem:[%s498 + $0x60] sm:$0xf]
        %v1129 = vld [vmem:[%s498 + $0x64] sm:$0xf]
        %v1130 = vld [vmem:[%s498 + $0x68] sm:$0xf]
        %v1131 = vld [vmem:[%s498 + $0x6c] sm:$0xf]
        %v1132 = vld [vmem:[%s498 + $0x70] sm:$0xf]
        %v1133 = vld [vmem:[%s498 + $0x74] sm:$0xf]
        %v1134 = vld [vmem:[%s498 + $0x78] sm:$0xf]
        %v1135 = vld [vmem:[%s498 + $0x7c] sm:$0xf]
        %v1136 = vunpack.c.l.bf16 %v1104
        %v1137 = vunpack.c.l.bf16 %v1105
        %v1138 = vunpack.c.l.bf16 %v1106
        %v1139 = vunpack.c.l.bf16 %v1107
        %v1140 = vunpack.c.l.bf16 %v1108
        %v1141 = vunpack.c.l.bf16 %v1109
        %v1142 = vunpack.c.l.bf16 %v1110
        %v1143 = vunpack.c.l.bf16 %v1111
        %v1144 = vunpack.c.l.bf16 %v1112
        %v1145 = vunpack.c.l.bf16 %v1113
        %v1146 = vunpack.c.l.bf16 %v1114
        %v1147 = vunpack.c.l.bf16 %v1115
        %v1148 = vunpack.c.l.bf16 %v1116
        %v1149 = vunpack.c.l.bf16 %v1117
        %v1150 = vunpack.c.l.bf16 %v1118
        %v1151 = vunpack.c.l.bf16 %v1119
        %v1152 = vunpack.c.l.bf16 %v1120
        %v1153 = vunpack.c.l.bf16 %v1121
        %v1154 = vunpack.c.l.bf16 %v1122
        %v1155 = vunpack.c.l.bf16 %v1123
        %v1156 = vunpack.c.l.bf16 %v1124
        %v1157 = vunpack.c.l.bf16 %v1125
        %v1158 = vunpack.c.l.bf16 %v1126
        %v1159 = vunpack.c.l.bf16 %v1127
        %v1160 = vunpack.c.l.bf16 %v1128
        %v1161 = vunpack.c.l.bf16 %v1129
        %v1162 = vunpack.c.l.bf16 %v1130
        %v1163 = vunpack.c.l.bf16 %v1131
        %v1164 = vunpack.c.l.bf16 %v1132
        %v1165 = vunpack.c.l.bf16 %v1133
        %v1166 = vunpack.c.l.bf16 %v1134
        %v1167 = vunpack.c.l.bf16 %v1135
        %v1168 = vmul.f32 %v978, %v1136
        %v1169 = vmul.f32 %v981, %v1137
        %v1170 = vmul.f32 %v986, %v1138
        %v1171 = vmul.f32 %v989, %v1139
        %v1172 = vmul.f32 %v994, %v1140
        %v1173 = vmul.f32 %v997, %v1141
        %v1174 = vmul.f32 %v1002, %v1142
        %v1175 = vmul.f32 %v1005, %v1143
        %v1176 = vmul.f32 %v1010, %v1144
        %v1177 = vmul.f32 %v1013, %v1145
        %v1178 = vmul.f32 %v1018, %v1146
        %v1179 = vmul.f32 %v1021, %v1147
        %v1180 = vmul.f32 %v1026, %v1148
        %v1181 = vmul.f32 %v1029, %v1149
        %v1182 = vmul.f32 %v1034, %v1150
        %v1183 = vmul.f32 %v1037, %v1151
        %v1184 = vmul.f32 %v1042, %v1152
        %v1185 = vmul.f32 %v1045, %v1153
        %v1186 = vmul.f32 %v1050, %v1154
        %v1187 = vmul.f32 %v1053, %v1155
        %v1188 = vmul.f32 %v1058, %v1156
        %v1189 = vmul.f32 %v1061, %v1157
        %v1190 = vmul.f32 %v1066, %v1158
        %v1191 = vmul.f32 %v1069, %v1159
        %v1192 = vmul.f32 %v1074, %v1160
        %v1193 = vmul.f32 %v1077, %v1161
        %v1194 = vmul.f32 %v1082, %v1162
        %v1195 = vmul.f32 %v1085, %v1163
        %v1196 = vmul.f32 %v1090, %v1164
        %v1197 = vmul.f32 %v1093, %v1165
        %v1198 = vmul.f32 %v1098, %v1166
        %v1199 = vmul.f32 %v1101, %v1167
        %v1200 = vld [vmem:[%s598] sm:$0xff]
        %v1201 = vld [vmem:[%s598 + $0x8] sm:$0xff]
        %v1202 = vld [vmem:[%s598 + $0x10] sm:$0xff]
        %v1203 = vld [vmem:[%s598 + $0x18] sm:$0xff]
        %v1204 = vld [vmem:[%s598 + $0x20] sm:$0xff]
        %v1205 = vld [vmem:[%s598 + $0x28] sm:$0xff]
        %v1206 = vld [vmem:[%s598 + $0x30] sm:$0xff]
        %v1207 = vld [vmem:[%s598 + $0x38] sm:$0xff]
        %v1208 = vld [vmem:[%s598 + $0x40] sm:$0xff]
        %v1209 = vld [vmem:[%s598 + $0x48] sm:$0xff]
        %v1210 = vld [vmem:[%s598 + $0x50] sm:$0xff]
        %v1211 = vld [vmem:[%s598 + $0x58] sm:$0xff]
        %v1212 = vld [vmem:[%s598 + $0x60] sm:$0xff]
        %v1213 = vld [vmem:[%s598 + $0x68] sm:$0xff]
        %v1214 = vld [vmem:[%s598 + $0x70] sm:$0xff]
        %v1215 = vld [vmem:[%s598 + $0x78] sm:$0xff]
        %v1216 = vld [vmem:[%s598 + $0x80] sm:$0xff]
        %v1217 = vld [vmem:[%s598 + $0x88] sm:$0xff]
        %v1218 = vld [vmem:[%s598 + $0x90] sm:$0xff]
        %v1219 = vld [vmem:[%s598 + $0x98] sm:$0xff]
        %v1220 = vld [vmem:[%s598 + $0xa0] sm:$0xff]
        %v1221 = vld [vmem:[%s598 + $0xa8] sm:$0xff]
        %v1222 = vld [vmem:[%s598 + $0xb0] sm:$0xff]
        %v1223 = vld [vmem:[%s598 + $0xb8] sm:$0xff]
        %v1224 = vld [vmem:[%s598 + $0xc0] sm:$0xff]
        %v1225 = vld [vmem:[%s598 + $0xc8] sm:$0xff]
        %v1226 = vld [vmem:[%s598 + $0xd0] sm:$0xff]
        %v1227 = vld [vmem:[%s598 + $0xd8] sm:$0xff]
        %v1228 = vld [vmem:[%s598 + $0xe0] sm:$0xff]
        %v1229 = vld [vmem:[%s598 + $0xe8] sm:$0xff]
        %v1230 = vld [vmem:[%s598 + $0xf0] sm:$0xff]
        %v1231 = vld [vmem:[%s598 + $0xf8] sm:$0xff]
        %1233 = vset.pattern.permute.xlu0 0
        %1234 = vperm.xlu0 %1233, %v1200
        %v1235 = vpop.permute.xlu0 %1234
        %1238 = vset.pattern.permute.xlu0 0
        %1239 = vperm.xlu0 %1238, %v1201
        %v1240 = vpop.permute.xlu0 %1239
        %1243 = vset.pattern.permute.xlu0 0
        %1244 = vperm.xlu0 %1243, %v1202
        %v1245 = vpop.permute.xlu0 %1244
        %1248 = vset.pattern.permute.xlu0 0
        %1249 = vperm.xlu0 %1248, %v1203
        %v1250 = vpop.permute.xlu0 %1249
        %1253 = vset.pattern.permute.xlu0 0
        %1254 = vperm.xlu0 %1253, %v1204
        %v1255 = vpop.permute.xlu0 %1254
        %1258 = vset.pattern.permute.xlu0 0
        %1259 = vperm.xlu0 %1258, %v1205
        %v1260 = vpop.permute.xlu0 %1259
        %1263 = vset.pattern.permute.xlu0 0
        %1264 = vperm.xlu0 %1263, %v1206
        %v1265 = vpop.permute.xlu0 %1264
        %1268 = vset.pattern.permute.xlu0 0
        %1269 = vperm.xlu0 %1268, %v1207
        %v1270 = vpop.permute.xlu0 %1269
        %1273 = vset.pattern.permute.xlu0 0
        %1274 = vperm.xlu0 %1273, %v1208
        %v1275 = vpop.permute.xlu0 %1274
        %1278 = vset.pattern.permute.xlu0 0
        %1279 = vperm.xlu0 %1278, %v1209
        %v1280 = vpop.permute.xlu0 %1279
        %1283 = vset.pattern.permute.xlu0 0
        %1284 = vperm.xlu0 %1283, %v1210
        %v1285 = vpop.permute.xlu0 %1284
        %1288 = vset.pattern.permute.xlu0 0
        %1289 = vperm.xlu0 %1288, %v1211
        %v1290 = vpop.permute.xlu0 %1289
        %1293 = vset.pattern.permute.xlu0 0
        %1294 = vperm.xlu0 %1293, %v1212
        %v1295 = vpop.permute.xlu0 %1294
        %1298 = vset.pattern.permute.xlu0 0
        %1299 = vperm.xlu0 %1298, %v1213
        %v1300 = vpop.permute.xlu0 %1299
        %1303 = vset.pattern.permute.xlu0 0
        %1304 = vperm.xlu0 %1303, %v1214
        %v1305 = vpop.permute.xlu0 %1304
        %1308 = vset.pattern.permute.xlu0 0
        %1309 = vperm.xlu0 %1308, %v1215
        %v1310 = vpop.permute.xlu0 %1309
        %1313 = vset.pattern.permute.xlu0 0
        %1314 = vperm.xlu0 %1313, %v1216
        %v1315 = vpop.permute.xlu0 %1314
        %1318 = vset.pattern.permute.xlu0 0
        %1319 = vperm.xlu0 %1318, %v1217
        %v1320 = vpop.permute.xlu0 %1319
        %1323 = vset.pattern.permute.xlu0 0
        %1324 = vperm.xlu0 %1323, %v1218
        %v1325 = vpop.permute.xlu0 %1324
        %1328 = vset.pattern.permute.xlu0 0
        %1329 = vperm.xlu0 %1328, %v1219
        %v1330 = vpop.permute.xlu0 %1329
        %1333 = vset.pattern.permute.xlu0 0
        %1334 = vperm.xlu0 %1333, %v1220
        %v1335 = vpop.permute.xlu0 %1334
        %1338 = vset.pattern.permute.xlu0 0
        %1339 = vperm.xlu0 %1338, %v1221
        %v1340 = vpop.permute.xlu0 %1339
        %1343 = vset.pattern.permute.xlu0 0
        %1344 = vperm.xlu0 %1343, %v1222
        %v1345 = vpop.permute.xlu0 %1344
        %1348 = vset.pattern.permute.xlu0 0
        %1349 = vperm.xlu0 %1348, %v1223
        %v1350 = vpop.permute.xlu0 %1349
        %1353 = vset.pattern.permute.xlu0 0
        %1354 = vperm.xlu0 %1353, %v1224
        %v1355 = vpop.permute.xlu0 %1354
        %1358 = vset.pattern.permute.xlu0 0
        %1359 = vperm.xlu0 %1358, %v1225
        %v1360 = vpop.permute.xlu0 %1359
        %1363 = vset.pattern.permute.xlu0 0
        %1364 = vperm.xlu0 %1363, %v1226
        %v1365 = vpop.permute.xlu0 %1364
        %1368 = vset.pattern.permute.xlu0 0
        %1369 = vperm.xlu0 %1368, %v1227
        %v1370 = vpop.permute.xlu0 %1369
        %1373 = vset.pattern.permute.xlu0 0
        %1374 = vperm.xlu0 %1373, %v1228
        %v1375 = vpop.permute.xlu0 %1374
        %1378 = vset.pattern.permute.xlu0 0
        %1379 = vperm.xlu0 %1378, %v1229
        %v1380 = vpop.permute.xlu0 %1379
        %1383 = vset.pattern.permute.xlu0 0
        %1384 = vperm.xlu0 %1383, %v1230
        %v1385 = vpop.permute.xlu0 %1384
        %1388 = vset.pattern.permute.xlu0 0
        %1389 = vperm.xlu0 %1388, %v1231
        %v1390 = vpop.permute.xlu0 %1389
        %v1392 = vmul.f32 %v1168, %v1235
        %v1393 = vmul.f32 %v1169, %v1240
        %v1394 = vmul.f32 %v1170, %v1245
        %v1395 = vmul.f32 %v1171, %v1250
        %v1396 = vmul.f32 %v1172, %v1255
        %v1397 = vmul.f32 %v1173, %v1260
        %v1398 = vmul.f32 %v1174, %v1265
        %v1399 = vmul.f32 %v1175, %v1270
        %v1400 = vmul.f32 %v1176, %v1275
        %v1401 = vmul.f32 %v1177, %v1280
        %v1402 = vmul.f32 %v1178, %v1285
        %v1403 = vmul.f32 %v1179, %v1290
        %v1404 = vmul.f32 %v1180, %v1295
        %v1405 = vmul.f32 %v1181, %v1300
        %v1406 = vmul.f32 %v1182, %v1305
        %v1407 = vmul.f32 %v1183, %v1310
        %v1408 = vmul.f32 %v1184, %v1315
        %v1409 = vmul.f32 %v1185, %v1320
        %v1410 = vmul.f32 %v1186, %v1325
        %v1411 = vmul.f32 %v1187, %v1330
        %v1412 = vmul.f32 %v1188, %v1335
        %v1413 = vmul.f32 %v1189, %v1340
        %v1414 = vmul.f32 %v1190, %v1345
        %v1415 = vmul.f32 %v1191, %v1350
        %v1416 = vmul.f32 %v1192, %v1355
        %v1417 = vmul.f32 %v1193, %v1360
        %v1418 = vmul.f32 %v1194, %v1365
        %v1419 = vmul.f32 %v1195, %v1370
        %v1420 = vmul.f32 %v1196, %v1375
        %v1421 = vmul.f32 %v1197, %v1380
        %v1422 = vmul.f32 %v1198, %v1385
        %v1423 = vmul.f32 %v1199, %v1390
        %v1424 = vpack.c.bf16 %v1393, %v1392
        %v1425 = vpack.c.bf16 %v1395, %v1394
        %v1426 = vpack.c.bf16 %v1397, %v1396
        %v1427 = vpack.c.bf16 %v1399, %v1398
        %v1428 = vpack.c.bf16 %v1401, %v1400
        %v1429 = vpack.c.bf16 %v1403, %v1402
        %v1430 = vpack.c.bf16 %v1405, %v1404
        %v1431 = vpack.c.bf16 %v1407, %v1406
        %v1432 = vpack.c.bf16 %v1409, %v1408
        %v1433 = vpack.c.bf16 %v1411, %v1410
        %v1434 = vpack.c.bf16 %v1413, %v1412
        %v1435 = vpack.c.bf16 %v1415, %v1414
        %v1436 = vpack.c.bf16 %v1417, %v1416
        %v1437 = vpack.c.bf16 %v1419, %v1418
        %v1438 = vpack.c.bf16 %v1421, %v1420
        %v1439 = vpack.c.bf16 %v1423, %v1422
        %v1440 = vld [vmem:[%s516] sm:$0xf]
        %v1441 = vld [vmem:[%s516 + $0x4] sm:$0xf]
        %v1442 = vld [vmem:[%s516 + $0x8] sm:$0xf]
        %v1443 = vld [vmem:[%s516 + $0xc] sm:$0xf]
        %v1444 = vld [vmem:[%s516 + $0x10] sm:$0xf]
        %v1445 = vld [vmem:[%s516 + $0x14] sm:$0xf]
        %v1446 = vld [vmem:[%s516 + $0x18] sm:$0xf]
        %v1447 = vld [vmem:[%s516 + $0x1c] sm:$0xf]
        %v1448 = vld [vmem:[%s516 + $0x20] sm:$0xf]
        %v1449 = vld [vmem:[%s516 + $0x24] sm:$0xf]
        %v1450 = vld [vmem:[%s516 + $0x28] sm:$0xf]
        %v1451 = vld [vmem:[%s516 + $0x2c] sm:$0xf]
        %v1452 = vld [vmem:[%s516 + $0x30] sm:$0xf]
        %v1453 = vld [vmem:[%s516 + $0x34] sm:$0xf]
        %v1454 = vld [vmem:[%s516 + $0x38] sm:$0xf]
        %v1455 = vld [vmem:[%s516 + $0x3c] sm:$0xf]
        %v1472 = vunpack.c.l.b16 %v1440
        %v1473 = vunpack.c.l.b16 %v1441
        %v1474 = vunpack.c.l.b16 %v1442
        %v1475 = vunpack.c.l.b16 %v1443
        %v1476 = vunpack.c.l.b16 %v1444
        %v1477 = vunpack.c.l.b16 %v1445
        %v1478 = vunpack.c.l.b16 %v1446
        %v1479 = vunpack.c.l.b16 %v1447
        %v1480 = vunpack.c.l.b16 %v1448
        %v1481 = vunpack.c.l.b16 %v1449
        %v1482 = vunpack.c.l.b16 %v1450
        %v1483 = vunpack.c.l.b16 %v1451
        %v1484 = vunpack.c.l.b16 %v1452
        %v1485 = vunpack.c.l.b16 %v1453
        %v1486 = vunpack.c.l.b16 %v1454
        %v1487 = vunpack.c.l.b16 %v1455
        %v1488 = vpack.c.b16 %v1473, %v1472
        %v1489 = vpack.c.b16 %v1475, %v1474
        %v1490 = vpack.c.b16 %v1477, %v1476
        %v1491 = vpack.c.b16 %v1479, %v1478
        %v1492 = vpack.c.b16 %v1481, %v1480
        %v1493 = vpack.c.b16 %v1483, %v1482
        %v1494 = vpack.c.b16 %v1485, %v1484
        %v1495 = vpack.c.b16 %v1487, %v1486
        %1504 = vmatprep.subr.bf16.mxu0 0
        %1505 = vmatpush1.bf16.msra.mxu0 %v1488
        %1506 = vmatprep.subr.bf16.mxu0 0
        %1507 = vmatpush1.bf16.msra.mxu0 %v1489
        %1508 = vmatprep.subr.bf16.mxu0 0
        %1509 = vmatpush1.bf16.msra.mxu0 %v1490
        %1510 = vmatprep.subr.bf16.mxu0 0
        %1511 = vmatpush1.bf16.msra.mxu0 %v1491
        %1512 = vmatprep.subr.bf16.mxu0 0
        %1513 = vmatpush1.bf16.msra.mxu0 %v1492
        %1514 = vmatprep.subr.bf16.mxu0 0
        %1515 = vmatpush1.bf16.msra.mxu0 %v1493
        %1516 = vmatprep.subr.bf16.mxu0 0
        %1517 = vmatpush1.bf16.msra.mxu0 %v1494
        %1518 = vmatprep.subr.bf16.mxu0 0
        %1519 = vmatpush1.bf16.msra.mxu0 %v1495
        %1520 = vmatprep.subr.bf16.mxu0 0
        %1521 = vmatpush1.bf16.msra.mxu0 0
        %1522 = vmatprep.subr.bf16.mxu0 0
        %1523 = vmatpush1.bf16.msra.mxu0 0
        %1524 = vmatprep.subr.bf16.mxu0 0
        %1525 = vmatpush1.bf16.msra.mxu0 0
        %1526 = vmatprep.subr.bf16.mxu0 0
        %1527 = vmatpush1.bf16.msra.mxu0 0
        %1528 = vmatprep.subr.bf16.mxu0 0
        %1529 = vmatpush1.bf16.msra.mxu0 0
        %1530 = vmatprep.subr.bf16.mxu0 0
        %1531 = vmatpush1.bf16.msra.mxu0 0
        %1532 = vmatprep.subr.bf16.mxu0 0
        %1533 = vmatpush1.bf16.msra.mxu0 0
        %1534 = vmatprep.subr.bf16.mxu0 0
        %1535 = vmatpush1.bf16.msra.mxu0 0
        %1536 = vmatprep.mubr.bf16.mxu0 0
        %1537 = vmatmul.mubr.bf16.gmra.mrb[0].mxu0 %v1424
        %v1538 = vpop.f32.mrb[0].mxu0
        %v1539 = vadd.f32 0.0, %v1538
        %v1540 = vpop.f32.mrb[0].mxu0
        %v1541 = vpop.f32.mrb[0].mxu0
        %v1542 = vadd.f32 0.0, %v1541
        %v1543 = vpop.f32.mrb[0].mxu0
        %1544 = vmatprep.mubr.bf16.mxu0 0
        %1545 = vmatmul.mubr.bf16.gmra.mrb[0].mxu0 %v1425
        %v1546 = vpop.f32.mrb[0].mxu0
        %v1547 = vadd.f32 0.0, %v1546
        %v1548 = vpop.f32.mrb[0].mxu0
        %v1549 = vpop.f32.mrb[0].mxu0
        %v1550 = vadd.f32 0.0, %v1549
        %v1551 = vpop.f32.mrb[0].mxu0
        %1552 = vmatprep.mubr.bf16.mxu0 0
        %1553 = vmatmul.mubr.bf16.gmra.mrb[0].mxu0 %v1426
        %v1554 = vpop.f32.mrb[0].mxu0
        %v1555 = vadd.f32 0.0, %v1554
        %v1556 = vpop.f32.mrb[0].mxu0
        %v1557 = vpop.f32.mrb[0].mxu0
        %v1558 = vadd.f32 0.0, %v1557
        %v1559 = vpop.f32.mrb[0].mxu0
        %1560 = vmatprep.mubr.bf16.mxu0 0
        %1561 = vmatmul.mubr.bf16.gmra.mrb[0].mxu0 %v1427
        %v1562 = vpop.f32.mrb[0].mxu0
        %v1563 = vadd.f32 0.0, %v1562
        %v1564 = vpop.f32.mrb[0].mxu0
        %v1565 = vpop.f32.mrb[0].mxu0
        %v1566 = vadd.f32 0.0, %v1565
        %v1567 = vpop.f32.mrb[0].mxu0
        %1568 = vmatprep.mubr.bf16.mxu0 0
        %1569 = vmatmul.mubr.bf16.gmra.mrb[0].mxu0 %v1428
        %v1570 = vpop.f32.mrb[0].mxu0
        %v1571 = vadd.f32 0.0, %v1570
        %v1572 = vpop.f32.mrb[0].mxu0
        %v1573 = vpop.f32.mrb[0].mxu0
        %v1574 = vadd.f32 0.0, %v1573
        %v1575 = vpop.f32.mrb[0].mxu0
        %1576 = vmatprep.mubr.bf16.mxu0 0
        %1577 = vmatmul.mubr.bf16.gmra.mrb[0].mxu0 %v1429
        %v1578 = vpop.f32.mrb[0].mxu0
        %v1579 = vadd.f32 0.0, %v1578
        %v1580 = vpop.f32.mrb[0].mxu0
        %v1581 = vpop.f32.mrb[0].mxu0
        %v1582 = vadd.f32 0.0, %v1581
        %v1583 = vpop.f32.mrb[0].mxu0
        %1584 = vmatprep.mubr.bf16.mxu0 0
        %1585 = vmatmul.mubr.bf16.gmra.mrb[0].mxu0 %v1430
        %v1586 = vpop.f32.mrb[0].mxu0
        %v1587 = vadd.f32 0.0, %v1586
        %v1588 = vpop.f32.mrb[0].mxu0
        %v1589 = vpop.f32.mrb[0].mxu0
        %v1590 = vadd.f32 0.0, %v1589
        %v1591 = vpop.f32.mrb[0].mxu0
        %1592 = vmatprep.mubr.bf16.mxu0 0
        %1593 = vmatmul.mubr.bf16.gmra.mrb[0].mxu0 %v1431
        %v1594 = vpop.f32.mrb[0].mxu0
        %v1595 = vadd.f32 0.0, %v1594
        %v1596 = vpop.f32.mrb[0].mxu0
        %v1597 = vpop.f32.mrb[0].mxu0
        %v1598 = vadd.f32 0.0, %v1597
        %v1599 = vpop.f32.mrb[0].mxu0
        %1600 = vmatprep.mubr.bf16.mxu0 0
        %1601 = vmatmul.mubr.bf16.gmra.mrb[0].mxu0 %v1432
        %v1602 = vpop.f32.mrb[0].mxu0
        %v1603 = vadd.f32 0.0, %v1602
        %v1604 = vpop.f32.mrb[0].mxu0
        %v1605 = vpop.f32.mrb[0].mxu0
        %v1606 = vadd.f32 0.0, %v1605
        %v1607 = vpop.f32.mrb[0].mxu0
        %1608 = vmatprep.mubr.bf16.mxu0 0
        %1609 = vmatmul.mubr.bf16.gmra.mrb[0].mxu0 %v1433
        %v1610 = vpop.f32.mrb[0].mxu0
        %v1611 = vadd.f32 0.0, %v1610
        %v1612 = vpop.f32.mrb[0].mxu0
        %v1613 = vpop.f32.mrb[0].mxu0
        %v1614 = vadd.f32 0.0, %v1613
        %v1615 = vpop.f32.mrb[0].mxu0
        %1616 = vmatprep.mubr.bf16.mxu0 0
        %1617 = vmatmul.mubr.bf16.gmra.mrb[0].mxu0 %v1434
        %v1618 = vpop.f32.mrb[0].mxu0
        %v1619 = vadd.f32 0.0, %v1618
        %v1620 = vpop.f32.mrb[0].mxu0
        %v1621 = vpop.f32.mrb[0].mxu0
        %v1622 = vadd.f32 0.0, %v1621
        %v1623 = vpop.f32.mrb[0].mxu0
        %1624 = vmatprep.mubr.bf16.mxu0 0
        %1625 = vmatmul.mubr.bf16.gmra.mrb[0].mxu0 %v1435
        %v1626 = vpop.f32.mrb[0].mxu0
        %v1627 = vadd.f32 0.0, %v1626
        %v1628 = vpop.f32.mrb[0].mxu0
        %v1629 = vpop.f32.mrb[0].mxu0
        %v1630 = vadd.f32 0.0, %v1629
        %v1631 = vpop.f32.mrb[0].mxu0
        %1632 = vmatprep.mubr.bf16.mxu0 0
        %1633 = vmatmul.mubr.bf16.gmra.mrb[0].mxu0 %v1436
        %v1634 = vpop.f32.mrb[0].mxu0
        %v1635 = vadd.f32 0.0, %v1634
        %v1636 = vpop.f32.mrb[0].mxu0
        %v1637 = vpop.f32.mrb[0].mxu0
        %v1638 = vadd.f32 0.0, %v1637
        %v1639 = vpop.f32.mrb[0].mxu0
        %1640 = vmatprep.mubr.bf16.mxu0 0
        %1641 = vmatmul.mubr.bf16.gmra.mrb[0].mxu0 %v1437
        %v1642 = vpop.f32.mrb[0].mxu0
        %v1643 = vadd.f32 0.0, %v1642
        %v1644 = vpop.f32.mrb[0].mxu0
        %v1645 = vpop.f32.mrb[0].mxu0
        %v1646 = vadd.f32 0.0, %v1645
        %v1647 = vpop.f32.mrb[0].mxu0
        %1648 = vmatprep.mubr.bf16.mxu0 0
        %1649 = vmatmul.mubr.bf16.gmra.mrb[0].mxu0 %v1438
        %v1650 = vpop.f32.mrb[0].mxu0
        %v1651 = vadd.f32 0.0, %v1650
        %v1652 = vpop.f32.mrb[0].mxu0
        %v1653 = vpop.f32.mrb[0].mxu0
        %v1654 = vadd.f32 0.0, %v1653
        %v1655 = vpop.f32.mrb[0].mxu0
        %1656 = vmatprep.mubr.bf16.mxu0 0
        %1657 = vmatmul.mubr.bf16.gmra.mrb[0].mxu0 %v1439
        %v1658 = vpop.f32.mrb[0].mxu0
        %v1659 = vadd.f32 0.0, %v1658
        %v1660 = vpop.f32.mrb[0].mxu0
        %v1661 = vpop.f32.mrb[0].mxu0
        %v1662 = vadd.f32 0.0, %v1661
        %v1663 = vpop.f32.mrb[0].mxu0
        %1664 = vdwg.mxu0
        %v1665 = vld [vmem:[#allocation2] sm:$0xff]
        %v1666 = vld [vmem:[#allocation2 + $0x8] sm:$0xff]
        %v1667 = vld [vmem:[#allocation2 + $0x10] sm:$0xff]
        %v1668 = vld [vmem:[#allocation2 + $0x18] sm:$0xff]
        %v1669 = vld [vmem:[#allocation2 + $0x20] sm:$0xff]
        %v1670 = vld [vmem:[#allocation2 + $0x28] sm:$0xff]
        %v1671 = vld [vmem:[#allocation2 + $0x30] sm:$0xff]
        %v1672 = vld [vmem:[#allocation2 + $0x38] sm:$0xff]
        %v1673 = vld [vmem:[#allocation2 + $0x40] sm:$0xff]
        %v1674 = vld [vmem:[#allocation2 + $0x48] sm:$0xff]
        %v1675 = vld [vmem:[#allocation2 + $0x50] sm:$0xff]
        %v1676 = vld [vmem:[#allocation2 + $0x58] sm:$0xff]
        %v1677 = vld [vmem:[#allocation2 + $0x60] sm:$0xff]
        %v1678 = vld [vmem:[#allocation2 + $0x68] sm:$0xff]
        %v1679 = vld [vmem:[#allocation2 + $0x70] sm:$0xff]
        %v1680 = vld [vmem:[#allocation2 + $0x78] sm:$0xff]
        %v1681 = vld [vmem:[%s507] sm:$0xff]
        %v1682 = vld [vmem:[%s507 + $0x8] sm:$0xff]
        %v1683 = vld [vmem:[%s507 + $0x10] sm:$0xff]
        %v1684 = vld [vmem:[%s507 + $0x18] sm:$0xff]
        %v1685 = vld [vmem:[%s507 + $0x20] sm:$0xff]
        %v1686 = vld [vmem:[%s507 + $0x28] sm:$0xff]
        %v1687 = vld [vmem:[%s507 + $0x30] sm:$0xff]
        %v1688 = vld [vmem:[%s507 + $0x38] sm:$0xff]
        %v1689 = vld [vmem:[%s507 + $0x40] sm:$0xff]
        %v1690 = vld [vmem:[%s507 + $0x48] sm:$0xff]
        %v1691 = vld [vmem:[%s507 + $0x50] sm:$0xff]
        %v1692 = vld [vmem:[%s507 + $0x58] sm:$0xff]
        %v1693 = vld [vmem:[%s507 + $0x60] sm:$0xff]
        %v1694 = vld [vmem:[%s507 + $0x68] sm:$0xff]
        %v1695 = vld [vmem:[%s507 + $0x70] sm:$0xff]
        %v1696 = vld [vmem:[%s507 + $0x78] sm:$0xff]
        %v1697 = vpack.c.bf16 %v1542, %v1539
        %v1698 = vpack.c.bf16 %v1550, %v1547
        %v1699 = vpack.c.bf16 %v1558, %v1555
        %v1700 = vpack.c.bf16 %v1566, %v1563
        %v1701 = vpack.c.bf16 %v1574, %v1571
        %v1702 = vpack.c.bf16 %v1582, %v1579
        %v1703 = vpack.c.bf16 %v1590, %v1587
        %v1704 = vpack.c.bf16 %v1598, %v1595
        %v1705 = vpack.c.bf16 %v1606, %v1603
        %v1706 = vpack.c.bf16 %v1614, %v1611
        %v1707 = vpack.c.bf16 %v1622, %v1619
        %v1708 = vpack.c.bf16 %v1630, %v1627
        %v1709 = vpack.c.bf16 %v1638, %v1635
        %v1710 = vpack.c.bf16 %v1646, %v1643
        %v1711 = vpack.c.bf16 %v1654, %v1651
        %v1712 = vpack.c.bf16 %v1662, %v1659
        %v1729 = vunpack.c.l.b16 %v1681
        %v1730 = vunpack.c.h.b16 %v1681
        %v1731 = vunpack.c.l.b16 %v1682
        %v1732 = vunpack.c.h.b16 %v1682
        %v1733 = vunpack.c.l.b16 %v1683
        %v1734 = vunpack.c.h.b16 %v1683
        %v1735 = vunpack.c.l.b16 %v1684
        %v1736 = vunpack.c.h.b16 %v1684
        %v1737 = vunpack.c.l.b16 %v1685
        %v1738 = vunpack.c.h.b16 %v1685
        %v1739 = vunpack.c.l.b16 %v1686
        %v1740 = vunpack.c.h.b16 %v1686
        %v1741 = vunpack.c.l.b16 %v1687
        %v1742 = vunpack.c.h.b16 %v1687
        %v1743 = vunpack.c.l.b16 %v1688
        %v1744 = vunpack.c.h.b16 %v1688
        %v1745 = vunpack.c.l.b16 %v1689
        %v1746 = vunpack.c.h.b16 %v1689
        %v1747 = vunpack.c.l.b16 %v1690
        %v1748 = vunpack.c.h.b16 %v1690
        %v1749 = vunpack.c.l.b16 %v1691
        %v1750 = vunpack.c.h.b16 %v1691
        %v1751 = vunpack.c.l.b16 %v1692
        %v1752 = vunpack.c.h.b16 %v1692
        %v1753 = vunpack.c.l.b16 %v1693
        %v1754 = vunpack.c.h.b16 %v1693
        %v1755 = vunpack.c.l.b16 %v1694
        %v1756 = vunpack.c.h.b16 %v1694
        %v1757 = vunpack.c.l.b16 %v1695
        %v1758 = vunpack.c.h.b16 %v1695
        %v1759 = vunpack.c.l.b16 %v1696
        %v1760 = vunpack.c.h.b16 %v1696
        %v1761 = vpack.c.b16 %v1731, %v1729
        %v1762 = vpack.c.b16 %v1732, %v1730
        %v1763 = vpack.c.b16 %v1735, %v1733
        %v1764 = vpack.c.b16 %v1736, %v1734
        %v1765 = vpack.c.b16 %v1739, %v1737
        %v1766 = vpack.c.b16 %v1740, %v1738
        %v1767 = vpack.c.b16 %v1743, %v1741
        %v1768 = vpack.c.b16 %v1744, %v1742
        %v1769 = vpack.c.b16 %v1747, %v1745
        %v1770 = vpack.c.b16 %v1748, %v1746
        %v1771 = vpack.c.b16 %v1751, %v1749
        %v1772 = vpack.c.b16 %v1752, %v1750
        %v1773 = vpack.c.b16 %v1755, %v1753
        %v1774 = vpack.c.b16 %v1756, %v1754
        %v1775 = vpack.c.b16 %v1759, %v1757
        %v1776 = vpack.c.b16 %v1760, %v1758
        %1793 = vmatprep.subr.bf16.mxu0 0
        %1794 = vmatpush1.bf16.msra.mxu0 %v1697
        %1795 = vmatprep.subr.bf16.mxu0 0
        %1796 = vmatpush1.bf16.msra.mxu0 %v1698
        %1797 = vmatprep.subr.bf16.mxu0 0
        %1798 = vmatpush1.bf16.msra.mxu0 %v1699
        %1799 = vmatprep.subr.bf16.mxu0 0
        %1800 = vmatpush1.bf16.msra.mxu0 %v1700
        %1801 = vmatprep.subr.bf16.mxu0 0
        %1802 = vmatpush1.bf16.msra.mxu0 %v1701
        %1803 = vmatprep.subr.bf16.mxu0 0
        %1804 = vmatpush1.bf16.msra.mxu0 %v1702
        %1805 = vmatprep.subr.bf16.mxu0 0
        %1806 = vmatpush1.bf16.msra.mxu0 %v1703
        %1807 = vmatprep.subr.bf16.mxu0 0
        %1808 = vmatpush1.bf16.msra.mxu0 %v1704
        %1809 = vmatprep.subr.bf16.mxu0 0
        %1810 = vmatpush1.bf16.msra.mxu0 %v1705
        %1811 = vmatprep.subr.bf16.mxu0 0
        %1812 = vmatpush1.bf16.msra.mxu0 %v1706
        %1813 = vmatprep.subr.bf16.mxu0 0
        %1814 = vmatpush1.bf16.msra.mxu0 %v1707
        %1815 = vmatprep.subr.bf16.mxu0 0
        %1816 = vmatpush1.bf16.msra.mxu0 %v1708
        %1817 = vmatprep.subr.bf16.mxu0 0
        %1818 = vmatpush1.bf16.msra.mxu0 %v1709
        %1819 = vmatprep.subr.bf16.mxu0 0
        %1820 = vmatpush1.bf16.msra.mxu0 %v1710
        %1821 = vmatprep.subr.bf16.mxu0 0
        %1822 = vmatpush1.bf16.msra.mxu0 %v1711
        %1823 = vmatprep.subr.bf16.mxu0 0
        %1824 = vmatpush1.bf16.msra.mxu0 %v1712
        %1825 = vmatprep.mubr.bf16.mxu0 %v1762
        %1826 = vmatmul.mubr.bf16.gmra.mrb[0].mxu0 %v1761
        %v1827 = vpop.f32.mrb[0].mxu0
        %v1828 = vadd.f32 0.0, %v1827
        %v1829 = vpop.f32.mrb[0].mxu0
        %v1830 = vpop.f32.mrb[0].mxu0
        %v1831 = vadd.f32 0.0, %v1830
        %v1832 = vpop.f32.mrb[0].mxu0
        %1833 = vmatprep.mubr.bf16.mxu0 %v1764
        %1834 = vmatmul.mubr.bf16.gmra.mrb[0].mxu0 %v1763
        %v1835 = vpop.f32.mrb[0].mxu0
        %v1836 = vadd.f32 0.0, %v1835
        %v1837 = vpop.f32.mrb[0].mxu0
        %v1838 = vpop.f32.mrb[0].mxu0
        %v1839 = vadd.f32 0.0, %v1838
        %v1840 = vpop.f32.mrb[0].mxu0
        %1841 = vmatprep.mubr.bf16.mxu0 %v1766
        %1842 = vmatmul.mubr.bf16.gmra.mrb[0].mxu0 %v1765
        %v1843 = vpop.f32.mrb[0].mxu0
        %v1844 = vadd.f32 0.0, %v1843
        %v1845 = vpop.f32.mrb[0].mxu0
        %v1846 = vpop.f32.mrb[0].mxu0
        %v1847 = vadd.f32 0.0, %v1846
        %v1848 = vpop.f32.mrb[0].mxu0
        %1849 = vmatprep.mubr.bf16.mxu0 %v1768
        %1850 = vmatmul.mubr.bf16.gmra.mrb[0].mxu0 %v1767
        %v1851 = vpop.f32.mrb[0].mxu0
        %v1852 = vadd.f32 0.0, %v1851
        %v1853 = vpop.f32.mrb[0].mxu0
        %v1854 = vpop.f32.mrb[0].mxu0
        %v1855 = vadd.f32 0.0, %v1854
        %v1856 = vpop.f32.mrb[0].mxu0
        %1857 = vmatprep.mubr.bf16.mxu0 %v1770
        %1858 = vmatmul.mubr.bf16.gmra.mrb[0].mxu0 %v1769
        %v1859 = vpop.f32.mrb[0].mxu0
        %v1860 = vadd.f32 0.0, %v1859
        %v1861 = vpop.f32.mrb[0].mxu0
        %v1862 = vpop.f32.mrb[0].mxu0
        %v1863 = vadd.f32 0.0, %v1862
        %v1864 = vpop.f32.mrb[0].mxu0
        %1865 = vmatprep.mubr.bf16.mxu0 %v1772
        %1866 = vmatmul.mubr.bf16.gmra.mrb[0].mxu0 %v1771
        %v1867 = vpop.f32.mrb[0].mxu0
        %v1868 = vadd.f32 0.0, %v1867
        %v1869 = vpop.f32.mrb[0].mxu0
        %v1870 = vpop.f32.mrb[0].mxu0
        %v1871 = vadd.f32 0.0, %v1870
        %v1872 = vpop.f32.mrb[0].mxu0
        %1873 = vmatprep.mubr.bf16.mxu0 %v1774
        %1874 = vmatmul.mubr.bf16.gmra.mrb[0].mxu0 %v1773
        %v1875 = vpop.f32.mrb[0].mxu0
        %v1876 = vadd.f32 0.0, %v1875
        %v1877 = vpop.f32.mrb[0].mxu0
        %v1878 = vpop.f32.mrb[0].mxu0
        %v1879 = vadd.f32 0.0, %v1878
        %v1880 = vpop.f32.mrb[0].mxu0
        %1881 = vmatprep.mubr.bf16.mxu0 %v1776
        %1882 = vmatmul.mubr.bf16.gmra.mrb[0].mxu0 %v1775
        %v1883 = vpop.f32.mrb[0].mxu0
        %v1884 = vadd.f32 0.0, %v1883
        %v1885 = vpop.f32.mrb[0].mxu0
        %v1886 = vpop.f32.mrb[0].mxu0
        %v1887 = vadd.f32 0.0, %v1886
        %v1888 = vpop.f32.mrb[0].mxu0
        %1889 = vdwg.mxu0
        %v1890 = vadd.f32 %v1665, %v1828
        %v1891 = vadd.f32 %v1666, %v1831
        %v1892 = vadd.f32 %v1667, %v1836
        %v1893 = vadd.f32 %v1668, %v1839
        %v1894 = vadd.f32 %v1669, %v1844
        %v1895 = vadd.f32 %v1670, %v1847
        %v1896 = vadd.f32 %v1671, %v1852
        %v1897 = vadd.f32 %v1672, %v1855
        %v1898 = vadd.f32 %v1673, %v1860
        %v1899 = vadd.f32 %v1674, %v1863
        %v1900 = vadd.f32 %v1675, %v1868
        %v1901 = vadd.f32 %v1676, %v1871
        %v1902 = vadd.f32 %v1677, %v1876
        %v1903 = vadd.f32 %v1678, %v1879
        %v1904 = vadd.f32 %v1679, %v1884
        %v1905 = vadd.f32 %v1680, %v1887
        %1906 = vst [vmem:[#allocation2] sm:$0xff] %v1890
        %1907 = vst [vmem:[#allocation2 + $0x8] sm:$0xff] %v1891
        %1908 = vst [vmem:[#allocation2 + $0x10] sm:$0xff] %v1892
        %1909 = vst [vmem:[#allocation2 + $0x18] sm:$0xff] %v1893
        %1910 = vst [vmem:[#allocation2 + $0x20] sm:$0xff] %v1894
        %1911 = vst [vmem:[#allocation2 + $0x28] sm:$0xff] %v1895
        %1912 = vst [vmem:[#allocation2 + $0x30] sm:$0xff] %v1896
        %1913 = vst [vmem:[#allocation2 + $0x38] sm:$0xff] %v1897
        %1914 = vst [vmem:[#allocation2 + $0x40] sm:$0xff] %v1898
        %1915 = vst [vmem:[#allocation2 + $0x48] sm:$0xff] %v1899
        %1916 = vst [vmem:[#allocation2 + $0x50] sm:$0xff] %v1900
        %1917 = vst [vmem:[#allocation2 + $0x58] sm:$0xff] %v1901
        %1918 = vst [vmem:[#allocation2 + $0x60] sm:$0xff] %v1902
        %1919 = vst [vmem:[#allocation2 + $0x68] sm:$0xff] %v1903
        %1920 = vst [vmem:[#allocation2 + $0x70] sm:$0xff] %v1904
        %1921 = vst [vmem:[#allocation2 + $0x78] sm:$0xff] %v1905
        %p1922 = scmp.eq.s32.totalorder %s44, 2
        // Predicated region
        $region89: #{_node_update.1} parent=59 // pred_check
          %p1923 = pneg %p1922
        $region90: #{_node_update.1} parent=59 // pred_check_branch
          %1925 = sbr.rel (%p1923) target = $region92
        $region91: #{_node_update.1} parent=59 // pred_region
          %v1926 = vld [vmem:[%s489] sm:$0xf]
          %v1927 = vld [vmem:[%s489 + $0x4] sm:$0xf]
          %v1928 = vld [vmem:[%s489 + $0x8] sm:$0xf]
          %v1929 = vld [vmem:[%s489 + $0xc] sm:$0xf]
          %v1930 = vld [vmem:[%s489 + $0x10] sm:$0xf]
          %v1931 = vld [vmem:[%s489 + $0x14] sm:$0xf]
          %v1932 = vld [vmem:[%s489 + $0x18] sm:$0xf]
          %v1933 = vld [vmem:[%s489 + $0x1c] sm:$0xf]
          %v1934 = vld [vmem:[%s489 + $0x20] sm:$0xf]
          %v1935 = vld [vmem:[%s489 + $0x24] sm:$0xf]
          %v1936 = vld [vmem:[%s489 + $0x28] sm:$0xf]
          %v1937 = vld [vmem:[%s489 + $0x2c] sm:$0xf]
          %v1938 = vld [vmem:[%s489 + $0x30] sm:$0xf]
          %v1939 = vld [vmem:[%s489 + $0x34] sm:$0xf]
          %v1940 = vld [vmem:[%s489 + $0x38] sm:$0xf]
          %v1941 = vld [vmem:[%s489 + $0x3c] sm:$0xf]
          %v1942 = vunpack.c.l.bf16 %v1926
          %v1943 = vunpack.c.l.bf16 %v1927
          %v1944 = vunpack.c.l.bf16 %v1928
          %v1945 = vunpack.c.l.bf16 %v1929
          %v1946 = vunpack.c.l.bf16 %v1930
          %v1947 = vunpack.c.l.bf16 %v1931
          %v1948 = vunpack.c.l.bf16 %v1932
          %v1949 = vunpack.c.l.bf16 %v1933
          %v1950 = vunpack.c.l.bf16 %v1934
          %v1951 = vunpack.c.l.bf16 %v1935
          %v1952 = vunpack.c.l.bf16 %v1936
          %v1953 = vunpack.c.l.bf16 %v1937
          %v1954 = vunpack.c.l.bf16 %v1938
          %v1955 = vunpack.c.l.bf16 %v1939
          %v1956 = vunpack.c.l.bf16 %v1940
          %v1957 = vunpack.c.l.bf16 %v1941
          %v1958 = vld [vmem:[%s9] sm:$0x1]
          %v1959 = vunpack.c.l.bf16 %v1958
          %v1960 = vlaneseq
          %v1961 = vshrl.u32 %v1960, 7
          %v1962 = vsub.s32 0, %v1961
          %v1963 = vrot.slane %v1959, %v1962
          %v1964 = vmul.f32 %v1942, %v1963
          %v1965 = vmul.f32 %v1943, %v1963
          %v1966 = vmul.f32 %v1944, %v1963
          %v1967 = vmul.f32 %v1945, %v1963
          %v1968 = vmul.f32 %v1946, %v1963
          %v1969 = vmul.f32 %v1947, %v1963
          %v1970 = vmul.f32 %v1948, %v1963
          %v1971 = vmul.f32 %v1949, %v1963
          %v1972 = vmul.f32 %v1950, %v1963
          %v1973 = vmul.f32 %v1951, %v1963
          %v1974 = vmul.f32 %v1952, %v1963
          %v1975 = vmul.f32 %v1953, %v1963
          %v1976 = vmul.f32 %v1954, %v1963
          %v1977 = vmul.f32 %v1955, %v1963
          %v1978 = vmul.f32 %v1956, %v1963
          %v1979 = vmul.f32 %v1957, %v1963
          %v1980 = vpack.c.bf16 %v1965, %v1964
          %v1981 = vpack.c.bf16 %v1967, %v1966
          %v1982 = vpack.c.bf16 %v1969, %v1968
          %v1983 = vpack.c.bf16 %v1971, %v1970
          %v1984 = vpack.c.bf16 %v1973, %v1972
          %v1985 = vpack.c.bf16 %v1975, %v1974
          %v1986 = vpack.c.bf16 %v1977, %v1976
          %v1987 = vpack.c.bf16 %v1979, %v1978
          %v1988 = vld [vmem:[#allocation14] sm:$0xf]
          %v1989 = vld [vmem:[#allocation14 + $0x4] sm:$0xf]
          %v1990 = vld [vmem:[#allocation14 + $0x8] sm:$0xf]
          %v1991 = vld [vmem:[#allocation14 + $0xc] sm:$0xf]
          %v1992 = vld [vmem:[#allocation14 + $0x10] sm:$0xf]
          %v1993 = vld [vmem:[#allocation14 + $0x14] sm:$0xf]
          %v1994 = vld [vmem:[#allocation14 + $0x18] sm:$0xf]
          %v1995 = vld [vmem:[#allocation14 + $0x1c] sm:$0xf]
          %v1996 = vld [vmem:[#allocation14 + $0x20] sm:$0xf]
          %v1997 = vld [vmem:[#allocation14 + $0x24] sm:$0xf]
          %v1998 = vld [vmem:[#allocation14 + $0x28] sm:$0xf]
          %v1999 = vld [vmem:[#allocation14 + $0x2c] sm:$0xf]
          %v2000 = vld [vmem:[#allocation14 + $0x30] sm:$0xf]
          %v2001 = vld [vmem:[#allocation14 + $0x34] sm:$0xf]
          %v2002 = vld [vmem:[#allocation14 + $0x38] sm:$0xf]
          %v2003 = vld [vmem:[#allocation14 + $0x3c] sm:$0xf]
          %v2020 = vunpack.c.l.b16 %v1988
          %v2021 = vunpack.c.l.b16 %v1989
          %v2022 = vunpack.c.l.b16 %v1990
          %v2023 = vunpack.c.l.b16 %v1991
          %v2024 = vunpack.c.l.b16 %v1992
          %v2025 = vunpack.c.l.b16 %v1993
          %v2026 = vunpack.c.l.b16 %v1994
          %v2027 = vunpack.c.l.b16 %v1995
          %v2028 = vunpack.c.l.b16 %v1996
          %v2029 = vunpack.c.l.b16 %v1997
          %v2030 = vunpack.c.l.b16 %v1998
          %v2031 = vunpack.c.l.b16 %v1999
          %v2032 = vunpack.c.l.b16 %v2000
          %v2033 = vunpack.c.l.b16 %v2001
          %v2034 = vunpack.c.l.b16 %v2002
          %v2035 = vunpack.c.l.b16 %v2003
          %v2036 = vpack.c.b16 %v2021, %v2020
          %v2037 = vpack.c.b16 %v2023, %v2022
          %v2038 = vpack.c.b16 %v2025, %v2024
          %v2039 = vpack.c.b16 %v2027, %v2026
          %v2040 = vpack.c.b16 %v2029, %v2028
          %v2041 = vpack.c.b16 %v2031, %v2030
          %v2042 = vpack.c.b16 %v2033, %v2032
          %v2043 = vpack.c.b16 %v2035, %v2034
          %2052 = vmatprep.subr.bf16.mxu0 0
          %2053 = vmatpush1.bf16.msra.mxu0 %v2036
          %2054 = vmatprep.subr.bf16.mxu0 0
          %2055 = vmatpush1.bf16.msra.mxu0 %v2037
          %2056 = vmatprep.subr.bf16.mxu0 0
          %2057 = vmatpush1.bf16.msra.mxu0 %v2038
          %2058 = vmatprep.subr.bf16.mxu0 0
          %2059 = vmatpush1.bf16.msra.mxu0 %v2039
          %2060 = vmatprep.subr.bf16.mxu0 0
          %2061 = vmatpush1.bf16.msra.mxu0 %v2040
          %2062 = vmatprep.subr.bf16.mxu0 0
          %2063 = vmatpush1.bf16.msra.mxu0 %v2041
          %2064 = vmatprep.subr.bf16.mxu0 0
          %2065 = vmatpush1.bf16.msra.mxu0 %v2042
          %2066 = vmatprep.subr.bf16.mxu0 0
          %2067 = vmatpush1.bf16.msra.mxu0 %v2043
          %2068 = vmatprep.subr.bf16.mxu0 0
          %2069 = vmatpush1.bf16.msra.mxu0 0
          %2070 = vmatprep.subr.bf16.mxu0 0
          %2071 = vmatpush1.bf16.msra.mxu0 0
          %2072 = vmatprep.subr.bf16.mxu0 0
          %2073 = vmatpush1.bf16.msra.mxu0 0
          %2074 = vmatprep.subr.bf16.mxu0 0
          %2075 = vmatpush1.bf16.msra.mxu0 0
          %2076 = vmatprep.subr.bf16.mxu0 0
          %2077 = vmatpush1.bf16.msra.mxu0 0
          %2078 = vmatprep.subr.bf16.mxu0 0
          %2079 = vmatpush1.bf16.msra.mxu0 0
          %2080 = vmatprep.subr.bf16.mxu0 0
          %2081 = vmatpush1.bf16.msra.mxu0 0
          %2082 = vmatprep.subr.bf16.mxu0 0
          %2083 = vmatpush1.bf16.msra.mxu0 0
          %2084 = vmatprep.mubr.bf16.mxu0 0
          %2085 = vmatmul.mubr.bf16.gmra.mrb[0].mxu0 %v1980
          %v2086 = vpop.f32.mrb[0].mxu0
          %v2087 = vadd.f32 0.0, %v2086
          %v2088 = vpop.f32.mrb[0].mxu0
          %v2089 = vpop.f32.mrb[0].mxu0
          %v2090 = vadd.f32 0.0, %v2089
          %v2091 = vpop.f32.mrb[0].mxu0
          %2092 = vmatprep.mubr.bf16.mxu0 0
          %2093 = vmatmul.mubr.bf16.gmra.mrb[0].mxu0 %v1981
          %v2094 = vpop.f32.mrb[0].mxu0
          %v2095 = vadd.f32 0.0, %v2094
          %v2096 = vpop.f32.mrb[0].mxu0
          %v2097 = vpop.f32.mrb[0].mxu0
          %v2098 = vadd.f32 0.0, %v2097
          %v2099 = vpop.f32.mrb[0].mxu0
          %2100 = vmatprep.mubr.bf16.mxu0 0
          %2101 = vmatmul.mubr.bf16.gmra.mrb[0].mxu0 %v1982
          %v2102 = vpop.f32.mrb[0].mxu0
          %v2103 = vadd.f32 0.0, %v2102
          %v2104 = vpop.f32.mrb[0].mxu0
          %v2105 = vpop.f32.mrb[0].mxu0
          %v2106 = vadd.f32 0.0, %v2105
          %v2107 = vpop.f32.mrb[0].mxu0
          %2108 = vmatprep.mubr.bf16.mxu0 0
          %2109 = vmatmul.mubr.bf16.gmra.mrb[0].mxu0 %v1983
          %v2110 = vpop.f32.mrb[0].mxu0
          %v2111 = vadd.f32 0.0, %v2110
          %v2112 = vpop.f32.mrb[0].mxu0
          %v2113 = vpop.f32.mrb[0].mxu0
          %v2114 = vadd.f32 0.0, %v2113
          %v2115 = vpop.f32.mrb[0].mxu0
          %2116 = vmatprep.mubr.bf16.mxu0 0
          %2117 = vmatmul.mubr.bf16.gmra.mrb[0].mxu0 %v1984
          %v2118 = vpop.f32.mrb[0].mxu0
          %v2119 = vadd.f32 0.0, %v2118
          %v2120 = vpop.f32.mrb[0].mxu0
          %v2121 = vpop.f32.mrb[0].mxu0
          %v2122 = vadd.f32 0.0, %v2121
          %v2123 = vpop.f32.mrb[0].mxu0
          %2124 = vmatprep.mubr.bf16.mxu0 0
          %2125 = vmatmul.mubr.bf16.gmra.mrb[0].mxu0 %v1985
          %v2126 = vpop.f32.mrb[0].mxu0
          %v2127 = vadd.f32 0.0, %v2126
          %v2128 = vpop.f32.mrb[0].mxu0
          %v2129 = vpop.f32.mrb[0].mxu0
          %v2130 = vadd.f32 0.0, %v2129
          %v2131 = vpop.f32.mrb[0].mxu0
          %2132 = vmatprep.mubr.bf16.mxu0 0
          %2133 = vmatmul.mubr.bf16.gmra.mrb[0].mxu0 %v1986
          %v2134 = vpop.f32.mrb[0].mxu0
          %v2135 = vadd.f32 0.0, %v2134
          %v2136 = vpop.f32.mrb[0].mxu0
          %v2137 = vpop.f32.mrb[0].mxu0
          %v2138 = vadd.f32 0.0, %v2137
          %v2139 = vpop.f32.mrb[0].mxu0
          %2140 = vmatprep.mubr.bf16.mxu0 0
          %2141 = vmatmul.mubr.bf16.gmra.mrb[0].mxu0 %v1987
          %v2142 = vpop.f32.mrb[0].mxu0
          %v2143 = vadd.f32 0.0, %v2142
          %v2144 = vpop.f32.mrb[0].mxu0
          %v2145 = vpop.f32.mrb[0].mxu0
          %v2146 = vadd.f32 0.0, %v2145
          %v2147 = vpop.f32.mrb[0].mxu0
          %2148 = vdwg.mxu0
          %v2149 = vld [vmem:[#allocation2] sm:$0xff]
          %v2150 = vld [vmem:[#allocation2 + $0x8] sm:$0xff]
          %v2151 = vld [vmem:[#allocation2 + $0x10] sm:$0xff]
          %v2152 = vld [vmem:[#allocation2 + $0x18] sm:$0xff]
          %v2153 = vld [vmem:[#allocation2 + $0x20] sm:$0xff]
          %v2154 = vld [vmem:[#allocation2 + $0x28] sm:$0xff]
          %v2155 = vld [vmem:[#allocation2 + $0x30] sm:$0xff]
          %v2156 = vld [vmem:[#allocation2 + $0x38] sm:$0xff]
          %v2157 = vld [vmem:[#allocation2 + $0x40] sm:$0xff]
          %v2158 = vld [vmem:[#allocation2 + $0x48] sm:$0xff]
          %v2159 = vld [vmem:[#allocation2 + $0x50] sm:$0xff]
          %v2160 = vld [vmem:[#allocation2 + $0x58] sm:$0xff]
          %v2161 = vld [vmem:[#allocation2 + $0x60] sm:$0xff]
          %v2162 = vld [vmem:[#allocation2 + $0x68] sm:$0xff]
          %v2163 = vld [vmem:[#allocation2 + $0x70] sm:$0xff]
          %v2164 = vld [vmem:[#allocation2 + $0x78] sm:$0xff]
          %v2165 = vadd.f32 %v2149, %v2087
          %v2166 = vadd.f32 %v2150, %v2090
          %v2167 = vadd.f32 %v2151, %v2095
          %v2168 = vadd.f32 %v2152, %v2098
          %v2169 = vadd.f32 %v2153, %v2103
          %v2170 = vadd.f32 %v2154, %v2106
          %v2171 = vadd.f32 %v2155, %v2111
          %v2172 = vadd.f32 %v2156, %v2114
          %v2173 = vadd.f32 %v2157, %v2119
          %v2174 = vadd.f32 %v2158, %v2122
          %v2175 = vadd.f32 %v2159, %v2127
          %v2176 = vadd.f32 %v2160, %v2130
          %v2177 = vadd.f32 %v2161, %v2135
          %v2178 = vadd.f32 %v2162, %v2138
          %v2179 = vadd.f32 %v2163, %v2143
          %v2180 = vadd.f32 %v2164, %v2146
          %v2181 = vmul.f32 %v2165, 0.3333333
          %v2182 = vmul.f32 %v2166, 0.3333333
          %v2183 = vmul.f32 %v2167, 0.3333333
          %v2184 = vmul.f32 %v2168, 0.3333333
          %v2185 = vmul.f32 %v2169, 0.3333333
          %v2186 = vmul.f32 %v2170, 0.3333333
          %v2187 = vmul.f32 %v2171, 0.3333333
          %v2188 = vmul.f32 %v2172, 0.3333333
          %v2189 = vmul.f32 %v2173, 0.3333333
          %v2190 = vmul.f32 %v2174, 0.3333333
          %v2191 = vmul.f32 %v2175, 0.3333333
          %v2192 = vmul.f32 %v2176, 0.3333333
          %v2193 = vmul.f32 %v2177, 0.3333333
          %v2194 = vmul.f32 %v2178, 0.3333333
          %v2195 = vmul.f32 %v2179, 0.3333333
          %v2196 = vmul.f32 %v2180, 0.3333333
          %v2197 = vld [vmem:[%s10] sm:$0x1]
          %v2199 = vlaneseq
          %v2200 = vshrl.u32 %v2199, 7
          %v2201 = vsub.s32 0, %v2200
          %v2202 = vrot.slane %v2197, %v2201
          %v2204 = vadd.f32 %v2181, %v2202
          %v2205 = vadd.f32 %v2182, %v2202
          %v2206 = vadd.f32 %v2183, %v2202
          %v2207 = vadd.f32 %v2184, %v2202
          %v2208 = vadd.f32 %v2185, %v2202
          %v2209 = vadd.f32 %v2186, %v2202
          %v2210 = vadd.f32 %v2187, %v2202
          %v2211 = vadd.f32 %v2188, %v2202
          %v2212 = vadd.f32 %v2189, %v2202
          %v2213 = vadd.f32 %v2190, %v2202
          %v2214 = vadd.f32 %v2191, %v2202
          %v2215 = vadd.f32 %v2192, %v2202
          %v2216 = vadd.f32 %v2193, %v2202
          %v2217 = vadd.f32 %v2194, %v2202
          %v2218 = vadd.f32 %v2195, %v2202
          %v2219 = vadd.f32 %v2196, %v2202
          %2220 = vst [vmem:[%s582] sm:$0xff] %v2204
          %2221 = vst [vmem:[%s582 + $0x8] sm:$0xff] %v2205
          %2222 = vst [vmem:[%s582 + $0x10] sm:$0xff] %v2206
          %2223 = vst [vmem:[%s582 + $0x18] sm:$0xff] %v2207
          %2224 = vst [vmem:[%s582 + $0x20] sm:$0xff] %v2208
          %2225 = vst [vmem:[%s582 + $0x28] sm:$0xff] %v2209
          %2226 = vst [vmem:[%s582 + $0x30] sm:$0xff] %v2210
          %2227 = vst [vmem:[%s582 + $0x38] sm:$0xff] %v2211
          %2228 = vst [vmem:[%s582 + $0x40] sm:$0xff] %v2212
          %2229 = vst [vmem:[%s582 + $0x48] sm:$0xff] %v2213
          %2230 = vst [vmem:[%s582 + $0x50] sm:$0xff] %v2214
          %2231 = vst [vmem:[%s582 + $0x58] sm:$0xff] %v2215
          %2232 = vst [vmem:[%s582 + $0x60] sm:$0xff] %v2216
          %2233 = vst [vmem:[%s582 + $0x68] sm:$0xff] %v2217
          %2234 = vst [vmem:[%s582 + $0x70] sm:$0xff] %v2218
          %2235 = vst [vmem:[%s582 + $0x78] sm:$0xff] %v2219
        $region92: #{_node_update.1} parent=59 // pred_fallthru
          _
        %s2236 = sand.u32 %s303, 1
        %s2237 = scalar_lea.sflag [#allocation7], %s2236
        %s2238 = sand.u32 %s303, 1
        %s2239 = smul.addr %s2238, 128
        %s2240 = scalar_lea.vmem [#allocation16], %s2239
        // Predicated region
        $region93: #{_node_update.1} parent=59 // pred_check
          %p2241 = pneg %p313
        $region94: #{_node_update.1} parent=59 // pred_check_branch
          %2243 = sbr.rel (%p2241) target = $region96
        $region95: #{_node_update.1} parent=59 // pred_region
          %s2244 = smul.u32 16, %s43
          %s2246 = ssub.s32 2048, 2048
          %2247 = vsyncadd %s2237, %s2246
          %s2248 = smul.addr %s2244, 128
          %s2249 = scalar_lea.hbm %s11, %s2248
          %s2250 = sshll.u32 %s2240, 4
          %s2251 = int_to_ptr.vmem [resolvable:$true] %s2250
          %2256 = dma.vmem_to_hbm [thread:$0]  %s2251, 2048, %s2249, %s2237, 128, 128, 8
        $region96: #{_node_update.1} parent=59 // pred_fallthru
          _
      $region60: #{_node_update.1} parent=5 // pred_fallthru
        _
      %p2257 = scmp.le.s32.totalorder 2, %s34
      // Predicated region
      $region97: #{_node_update.1} parent=5 // pred_check
        %p2258 = pneg %p2257
      $region98: #{_node_update.1} parent=5 // pred_check_branch
        %2260 = sbr.rel (%p2258) target = $region100
      $region99: #{_node_update.1} parent=5 // pred_region
        %s2261 = ssub.s32 %s34, 2
        // Predicated region
        $region101: #{_node_update.1} parent=99 // pred_check
          %p2262 = pneg %p319
        $region102: #{_node_update.1} parent=99 // pred_check_branch
          %2264 = sbr.rel (%p2262) target = $region104
        $region103: #{_node_update.1} parent=99 // pred_region
          %s2265 = sand.u32 %s304, 1
          %s2266 = scalar_lea.sflag [#allocation7], %s2265
          %s2267 = sand.u32 %s304, 1
          %s2268 = smul.addr %s2267, 128
          %s2269 = scalar_lea.vmem [#allocation16], %s2268
          %2270 = dma.done %s2266, 2048
        $region104: #{_node_update.1} parent=99 // pred_fallthru
          _
      $region100: #{_node_update.1} parent=5 // pred_fallthru
        _
    $region6: #{_node_update.1} parent=1 // loop_footer
      %s38 = sadd.s32 1, %s34
    $region7: #{_node_update.1} parent=1 // loop_footer_branch
      %33 = sbr.rel target = $region3
    $region8: #{_node_update.1} parent=1 // loop_exit
      _
    %2271 = vsyncpa [#allocation6], 1
    %s2272 = scalar_lea.sflag [#allocation6], 1
    %2273 = vsyncpa %s2272, 1
    %2274 = vsyncpa [#allocation9], 1
    %s2275 = scalar_lea.sflag [#allocation9], 1
    %2276 = vsyncpa %s2275, 1
    %2277 = vsyncpa [#allocation12], 1
    %s2278 = scalar_lea.sflag [#allocation12], 1
    %2279 = vsyncpa %s2278, 1
    %2280 = vsyncpa [#allocation15], 1
    %2281 = vsyncpa [#allocation7], 1
    %s2282 = scalar_lea.sflag [#allocation7], 1
    %2283 = vsyncpa %s2282, 1

</llo_original>
